<compile_context>
chip_gen: v6e
topology: v6e:2x2x1
jax: 0.10.0
libtpu: 0.0.40
codegen_flags: <defaults>
</compile_context>

<pallas_src>
import jax
import jax.numpy as jnp
from jax.experimental import pallas as pl
from jax.experimental.pallas import tpu as pltpu

LANE = 128


def _round_up(n, m):
    return (n + m - 1) // m * m


def mlp_kernel(x_ref, w1_ref, b1_ref, w2_ref, b2_ref, w3_ref, b3_ref, o_ref):
    # Feed the MXU bf16, accumulate in f32; keep elementwise bias/ReLU in f32.
    x = x_ref[...].astype(jnp.bfloat16)
    h1 = jnp.dot(x, w1_ref[...], preferred_element_type=jnp.float32)
    h1 = jnp.maximum(h1 + b1_ref[...], 0.0).astype(jnp.bfloat16)
    h2 = jnp.dot(h1, w2_ref[...], preferred_element_type=jnp.float32)
    h2 = jnp.maximum(h2 + b2_ref[...], 0.0).astype(jnp.bfloat16)
    out = jnp.dot(h2, w3_ref[...], preferred_element_type=jnp.float32) + b3_ref[...]
    o_ref[...] = out.astype(o_ref.dtype)


def prepare_params(params):
    """Zero-pad feature dims up to multiples of 128 lanes; store weights bf16, biases f32.

    Padding is semantics-preserving: padded w2/b2 columns produce h2 columns that are
    ReLU(0) == 0, padded w3 rows are zero (so they contribute nothing), and padded output
    columns are zero and sliced off in the wrapper (unless return_padded=True).
    """
    def pad_to(a, rows, cols):
        return jnp.pad(a, ((0, rows - a.shape[0]), (0, cols - a.shape[1])))

    D_in, H1 = params["w1"].shape
    H2 = params["w2"].shape[1]
    C = params["w3"].shape[1]
    H1p, H2p, Cp = (_round_up(d, LANE) for d in (H1, H2, C))

    return {
        "w1": pad_to(params["w1"], D_in, H1p).astype(jnp.bfloat16),
        "b1": pad_to(params["b1"], 1, H1p).astype(jnp.float32),
        "w2": pad_to(params["w2"], H1p, H2p).astype(jnp.bfloat16),
        "b2": pad_to(params["b2"], 1, H2p).astype(jnp.float32),
        "w3": pad_to(params["w3"], H2p, Cp).astype(jnp.bfloat16),
        "b3": pad_to(params["b3"], 1, Cp).astype(jnp.float32),
    }


def mlp_forward(x, prepped, num_classes, *, batch_tile=1024, out_dtype=jnp.float32,
                return_padded=False, core_parallel=False):
    """Fused MLP forward.

    x: [B, input_dim], float32 or bfloat16 (pass bf16 straight through if the producer
       already emits it -- no wrapper-side cast is added here).
    prepped: lane-padded params from prepare_params().
    batch_tile: rows per grid step; multiple of 128.  1024 default (fits the v5e 16 MiB
       scoped VMEM untouched); v7x callers may use 2048 but should keep B_pad/batch_tile >= 2.
    out_dtype / return_padded: bf16 + padded [B_pad, 128] block for bandwidth-sensitive
       consumers; defaults reproduce the PyTorch module output exactly-shaped in f32.
    core_parallel: emit pltpu.CORE_PARALLEL on the batch axis (v7x 2-TC sharding).
    """
    B, D_in = x.shape
    H1p = prepped["w1"].shape[1]
    H2p = prepped["w2"].shape[1]
    Cp = prepped["w3"].shape[1]
    assert prepped["w1"].shape[0] == D_in

    # Shrink the tile for small batches; keep it a 128-multiple so MXU M rows stay full
    # (also a 16-multiple for bf16 sublane packing).
    batch_tile = min(batch_tile, _round_up(B, LANE))
    assert batch_tile % LANE == 0, "batch_tile must be a multiple of 128"

    B_pad = _round_up(B, batch_tile)
    if B_pad != B:
        x = jnp.pad(x, ((0, B_pad - B), (0, 0)))

    grid = (B_pad // batch_tile,)

    in_specs = [
        pl.BlockSpec((batch_tile, D_in), lambda i: (i, 0)),   # x (tiled over batch)
        # Weights/biases: constant block index -> DMA'd once, resident across grid steps.
        pl.BlockSpec((D_in, H1p), lambda i: (0, 0)),          # w1 (bf16)
        pl.BlockSpec((1, H1p), lambda i: (0, 0)),             # b1 (f32)
        pl.BlockSpec((H1p, H2p), lambda i: (0, 0)),           # w2 (bf16)
        pl.BlockSpec((1, H2p), lambda i: (0, 0)),             # b2 (f32)
        pl.BlockSpec((H2p, Cp), lambda i: (0, 0)),            # w3 (bf16)
        pl.BlockSpec((1, Cp), lambda i: (0, 0)),              # b3 (f32)
    ]
    out_spec = pl.BlockSpec((batch_tile, Cp), lambda i: (i, 0))

    x_bytes = jnp.dtype(x.dtype).itemsize
    out_bytes = jnp.dtype(out_dtype).itemsize
    weight_bytes = 2 * (D_in * H1p + H1p * H2p + H2p * Cp)    # bf16

    flops = 2 * B_pad * (D_in * H1p + H1p * H2p + H2p * Cp)
    bytes_accessed = (
        B_pad * D_in * x_bytes + B_pad * Cp * out_bytes       # x in, out
        + weight_bytes
        + 4 * (H1p + H2p + Cp)                                # f32 biases
    )

    # VMEM footprint estimate: double-buffered x/out tiles + double-buffered weights
    # + generous in-kernel temporaries.  Only raise the scoped limit when we would blow
    # the v5e 16 MiB default (i.e. tiles pushed past ~1024 rows).
    vmem_bytes = (
        2 * batch_tile * D_in * x_bytes
        + 2 * batch_tile * Cp * out_bytes
        + 2 * weight_bytes
        + 6 * batch_tile * H1p * 4
    )
    compiler_kwargs = {
        # Batch axis is embarrassingly parallel; CORE_PARALLEL makes the v7x 2-TC split
        # explicit when requested.
        "dimension_semantics": (pltpu.CORE_PARALLEL,) if core_parallel else ("parallel",),
    }
    if vmem_bytes > 14 * 1024 * 1024:
        compiler_kwargs["vmem_limit_bytes"] = min(
            _round_up(vmem_bytes + (4 << 20), 1 << 20), 48 << 20)

    out_padded = pl.pallas_call(
        mlp_kernel,
        out_shape=jax.ShapeDtypeStruct((B_pad, Cp), out_dtype),
        grid_spec=pltpu.PrefetchScalarGridSpec(
            num_scalar_prefetch=0,
            grid=grid,
            in_specs=in_specs,
            out_specs=out_spec,
        ),
        compiler_params=pltpu.CompilerParams(**compiler_kwargs),
        cost_estimate=pl.CostEstimate(
            flops=flops, transcendentals=0, bytes_accessed=bytes_accessed),
    )(x, prepped["w1"], prepped["b1"], prepped["w2"], prepped["b2"],
      prepped["w3"], prepped["b3"])

    if return_padded:
        return out_padded                      # lane-dense [B_pad, Cp], no extra XLA slice
    return out_padded[:B, :num_classes]


def init_params(key, input_dim=784, hidden_dims=(128, 64), num_classes=10):
    """Deterministic PyTorch-nn.Linear-style uniform init: U(-1/sqrt(fan_in), 1/sqrt(fan_in)).

    Weights stored [in_features, out_features] (transposed vs nn.Linear) so y = x @ W + b.
    """
    dims = [input_dim] + list(hidden_dims) + [num_classes]
    params = {}
    for li, (fan_in, fan_out) in enumerate(zip(dims[:-1], dims[1:]), start=1):
        key, kw, kb = jax.random.split(key, 3)
        bound = 1.0 / jnp.sqrt(fan_in)
        params[f"w{li}"] = jax.random.uniform(
            kw, (fan_in, fan_out), jnp.float32, minval=-bound, maxval=bound)
        params[f"b{li}"] = jax.random.uniform(
            kb, (1, fan_out), jnp.float32, minval=-bound, maxval=bound)
    return params


def mlp_reference(x, params):
    h1 = jnp.maximum(x @ params["w1"] + params["b1"], 0.0)
    h2 = jnp.maximum(h1 @ params["w2"] + params["b2"], 0.0)
    return h2 @ params["w3"] + params["b3"]


if __name__ == "__main__":
    key = jax.random.PRNGKey(0)
    key, kx = jax.random.split(key)

    # Small deterministic test: non-multiple batch (200) exercises the pad/slice path;
    # the tile auto-shrinks to 256 rows here, while the default (1024) is what a real
    # training/eval batch would use.
    B, D_IN, HIDDEN, NUM_CLASSES = 200, 784, (128, 64), 10
    x = jax.random.normal(kx, (B, D_IN), jnp.float32)
    params = init_params(key, D_IN, HIDDEN, NUM_CLASSES)
    prepped = prepare_params(params)

    out = mlp_forward(x, prepped, NUM_CLASSES)  # default batch_tile=1024 -> shrunk to 256
    out = jax.block_until_ready(out)

    ref = mlp_reference(x, params)  # pure-f32 reference of the PyTorch module
    assert out.shape == (B, NUM_CLASSES)
    # Tolerance loosened for bf16 matmul inputs (f32 accumulation).
    assert jnp.allclose(out, ref, atol=2e-2, rtol=2e-2), "mismatch vs reference"

    print("KERNEL_OK")
</pallas_src>

<mosaic_0001>
module attributes {stable_mosaic.version = 11 : i64} {
  func.func @mlp_kernel(%arg0: i32, %arg1: memref<256x784xf32, #tpu.memory_space<vmem>>, %arg2: memref<784x128xbf16, #tpu.memory_space<vmem>>, %arg3: memref<1x128xf32, #tpu.memory_space<vmem>>, %arg4: memref<128x128xbf16, #tpu.memory_space<vmem>>, %arg5: memref<1x128xf32, #tpu.memory_space<vmem>>, %arg6: memref<128x128xbf16, #tpu.memory_space<vmem>>, %arg7: memref<1x128xf32, #tpu.memory_space<vmem>>, %arg8: memref<256x128xf32, #tpu.memory_space<vmem>>) attributes {dimension_semantics = [#tpu.dimension_semantics<parallel>], iteration_bounds = array<i64: 1>, scalar_prefetch = 0 : i64, scratch_operands = 0 : i64, tpu.core_type = #tpu.core_type<tc>, window_params = [{transform_indices = @transform_0, window_bounds = array<i64: 256, 784>}, {pipeline_mode = #tpu.pipeline_mode<synchronous>, transform_indices = @transform_1, window_bounds = array<i64: 784, 128>}, {pipeline_mode = #tpu.pipeline_mode<synchronous>, transform_indices = @transform_2, window_bounds = array<i64: 1, 128>}, {pipeline_mode = #tpu.pipeline_mode<synchronous>, transform_indices = @transform_3, window_bounds = array<i64: 128, 128>}, {pipeline_mode = #tpu.pipeline_mode<synchronous>, transform_indices = @transform_4, window_bounds = array<i64: 1, 128>}, {pipeline_mode = #tpu.pipeline_mode<synchronous>, transform_indices = @transform_5, window_bounds = array<i64: 128, 128>}, {pipeline_mode = #tpu.pipeline_mode<synchronous>, transform_indices = @transform_6, window_bounds = array<i64: 1, 128>}, {transform_indices = @transform_7, window_bounds = array<i64: 256, 128>}]} {
    %c0 = arith.constant 0 : index
    %c0_0 = arith.constant 0 : index
    %0 = vector.load %arg1[%c0, %c0_0] : memref<256x784xf32, #tpu.memory_space<vmem>>, vector<256x784xf32>
    %1 = arith.truncf %0 : vector<256x784xf32> to vector<256x784xbf16>
    %c0_1 = arith.constant 0 : index
    %c0_2 = arith.constant 0 : index
    %2 = vector.load %arg2[%c0_1, %c0_2] : memref<784x128xbf16, #tpu.memory_space<vmem>>, vector<784x128xbf16>
    %cst = arith.constant dense<0.000000e+00> : vector<256x128xf32>
    %3 = tpu.matmul %1, %2, %cst {dimension_numbers = #tpu.dot_dimension_numbers<[1], [0], [0], [1], [0, 0, 1, 1], [], []>} : vector<256x784xbf16>, vector<784x128xbf16>, vector<256x128xf32> -> vector<256x128xf32>
    %c0_3 = arith.constant 0 : index
    %c0_4 = arith.constant 0 : index
    %4 = vector.load %arg3[%c0_3, %c0_4] : memref<1x128xf32, #tpu.memory_space<vmem>>, vector<1x128xf32>
    %5 = vector.broadcast %4 : vector<1x128xf32> to vector<256x128xf32>
    %6 = arith.addf %3, %5 : vector<256x128xf32>
    %cst_5 = arith.constant 0.000000e+00 : f32
    %7 = vector.broadcast %cst_5 : f32 to vector<256x128xf32>
    %8 = arith.maximumf %6, %7 : vector<256x128xf32>
    %9 = arith.truncf %8 : vector<256x128xf32> to vector<256x128xbf16>
    %c0_6 = arith.constant 0 : index
    %c0_7 = arith.constant 0 : index
    %10 = vector.load %arg4[%c0_6, %c0_7] : memref<128x128xbf16, #tpu.memory_space<vmem>>, vector<128x128xbf16>
    %cst_8 = arith.constant dense<0.000000e+00> : vector<256x128xf32>
    %11 = tpu.matmul %9, %10, %cst_8 {dimension_numbers = #tpu.dot_dimension_numbers<[1], [0], [0], [1], [0, 0, 1, 1], [], []>} : vector<256x128xbf16>, vector<128x128xbf16>, vector<256x128xf32> -> vector<256x128xf32>
    %c0_9 = arith.constant 0 : index
    %c0_10 = arith.constant 0 : index
    %12 = vector.load %arg5[%c0_9, %c0_10] : memref<1x128xf32, #tpu.memory_space<vmem>>, vector<1x128xf32>
    %13 = vector.broadcast %12 : vector<1x128xf32> to vector<256x128xf32>
    %14 = arith.addf %11, %13 : vector<256x128xf32>
    %cst_11 = arith.constant 0.000000e+00 : f32
    %15 = vector.broadcast %cst_11 : f32 to vector<256x128xf32>
    %16 = arith.maximumf %14, %15 : vector<256x128xf32>
    %17 = arith.truncf %16 : vector<256x128xf32> to vector<256x128xbf16>
    %c0_12 = arith.constant 0 : index
    %c0_13 = arith.constant 0 : index
    %18 = vector.load %arg6[%c0_12, %c0_13] : memref<128x128xbf16, #tpu.memory_space<vmem>>, vector<128x128xbf16>
    %cst_14 = arith.constant dense<0.000000e+00> : vector<256x128xf32>
    %19 = tpu.matmul %17, %18, %cst_14 {dimension_numbers = #tpu.dot_dimension_numbers<[1], [0], [0], [1], [0, 0, 1, 1], [], []>} : vector<256x128xbf16>, vector<128x128xbf16>, vector<256x128xf32> -> vector<256x128xf32>
    %c0_15 = arith.constant 0 : index
    %c0_16 = arith.constant 0 : index
    %20 = vector.load %arg7[%c0_15, %c0_16] : memref<1x128xf32, #tpu.memory_space<vmem>>, vector<1x128xf32>
    %21 = vector.broadcast %20 : vector<1x128xf32> to vector<256x128xf32>
    %22 = arith.addf %19, %21 : vector<256x128xf32>
    %c0_17 = arith.constant 0 : index
    %c0_18 = arith.constant 0 : index
    %23 = vector.load %arg8[%c0_17, %c0_18] : memref<256x128xf32, #tpu.memory_space<vmem>>, vector<256x128xf32>
    tpu.vector_store %arg8[%c0_17, %c0_18], %22 {strides = array<i32>} : memref<256x128xf32, #tpu.memory_space<vmem>>, vector<256x128xf32>,
    return
  }
  func.func @transform_0(%arg0: i32) -> (i32, i32) {
    %c0_i32 = arith.constant 0 : i32
    %c0_i32_0 = arith.constant 0 : i32
    return %arg0, %c0_i32 : i32, i32
  }
  func.func @transform_1(%arg0: i32) -> (i32, i32) {
    %c0_i32 = arith.constant 0 : i32
    %c0_i32_0 = arith.constant 0 : i32
    %c0_i32_1 = arith.constant 0 : i32
    return %c0_i32, %c0_i32_0 : i32, i32
  }
  func.func @transform_2(%arg0: i32) -> (i32, i32) {
    %c0_i32 = arith.constant 0 : i32
    %c0_i32_0 = arith.constant 0 : i32
    %c0_i32_1 = arith.constant 0 : i32
    return %c0_i32, %c0_i32_0 : i32, i32
  }
  func.func @transform_3(%arg0: i32) -> (i32, i32) {
    %c0_i32 = arith.constant 0 : i32
    %c0_i32_0 = arith.constant 0 : i32
    %c0_i32_1 = arith.constant 0 : i32
    return %c0_i32, %c0_i32_0 : i32, i32
  }
  func.func @transform_4(%arg0: i32) -> (i32, i32) {
    %c0_i32 = arith.constant 0 : i32
    %c0_i32_0 = arith.constant 0 : i32
    %c0_i32_1 = arith.constant 0 : i32
    return %c0_i32, %c0_i32_0 : i32, i32
  }
  func.func @transform_5(%arg0: i32) -> (i32, i32) {
    %c0_i32 = arith.constant 0 : i32
    %c0_i32_0 = arith.constant 0 : i32
    %c0_i32_1 = arith.constant 0 : i32
    return %c0_i32, %c0_i32_0 : i32, i32
  }
  func.func @transform_6(%arg0: i32) -> (i32, i32) {
    %c0_i32 = arith.constant 0 : i32
    %c0_i32_0 = arith.constant 0 : i32
    %c0_i32_1 = arith.constant 0 : i32
    return %c0_i32, %c0_i32_0 : i32, i32
  }
  func.func @transform_7(%arg0: i32) -> (i32, i32) {
    %c0_i32 = arith.constant 0 : i32
    %c0_i32_0 = arith.constant 0 : i32
    return %arg0, %c0_i32 : i32, i32
  }
}

</mosaic_0001>

<llo_original>
// kernel: tpu_custom_call.1
$region0: #{tpu_custom_call.1}
  #allocation0 [shape = 'u32[]', space=smem, size = 0x4, offset = 0x4, fixed_abs, tag = 'smem constant byte address 0x4 - core index']
  #allocation1 [shape = 'u32[144,128]{1,0:T(1,128)}', space=vmem, size = 0x12000, scoped, tag = 'internal scratch']
  %s0 = inlined_call_operand.vmem [shape: f32[256,784], index: 0, kind: input, shape index: {}]
  %s1 = inlined_call_operand.vmem [shape: bf16[784,128], index: 1, kind: input, shape index: {}]
  %s2 = inlined_call_operand.vmem [shape: f32[1,128], index: 2, kind: input, shape index: {}]
  %s3 = inlined_call_operand.vmem [shape: bf16[128,128], index: 3, kind: input, shape index: {}]
  %s4 = inlined_call_operand.vmem [shape: f32[1,128], index: 4, kind: input, shape index: {}]
  %s5 = inlined_call_operand.vmem [shape: bf16[128,128], index: 5, kind: input, shape index: {}]
  %s6 = inlined_call_operand.vmem [shape: f32[1,128], index: 6, kind: input, shape index: {}]
  %s7 = inlined_call_operand.hbm [shape: f32[256,128], index: 7, kind: output, shape index: {}]
  %s8 = sld [smem:[#allocation0]]
  $region38: #{tpu_custom_call.1} parent=0
    _
  %s10 = ssub.s32 1, %s8
  %s11 = scalar_select 0, %s10, %s8
  $region1: #{tpu_custom_call.1} parent=0
    #allocation2 [shape = 'u8[131072]{0}', space=vmem, size = 0x20000, scoped, tag = 'output window, operand 0, single buffered']
    #allocation3 [shape = 's32[1]{0}', space=sflag, size = 0x4, scoped, tag = 'scoped memory for tpu_custom_call.1']
    %12 = vsyncpa [#allocation3], 0
    // Predicated region
    $region2: #{tpu_custom_call.1} parent=1 // pred_check
      _
    $region3: #{tpu_custom_call.1} parent=1 // pred_check_branch
      %14 = sbr.rel (0) target = $region5
    $region4: #{tpu_custom_call.1} parent=1 // pred_region
      _
    $region5: #{tpu_custom_call.1} parent=1 // pred_fallthru
      _
    // Predicated region
    $region6: #{tpu_custom_call.1} parent=1 // pred_check
      _
    $region7: #{tpu_custom_call.1} parent=1 // pred_check_branch
      %16 = sbr.rel (0) target = $region9
    $region8: #{tpu_custom_call.1} parent=1 // pred_region
      _
    $region9: #{tpu_custom_call.1} parent=1 // pred_fallthru
      _
    // Predicated region
    $region10: #{tpu_custom_call.1} parent=1 // pred_check
      _
    $region11: #{tpu_custom_call.1} parent=1 // pred_check_branch
      %18 = sbr.rel (0) target = $region13
    $region12: #{tpu_custom_call.1} parent=1 // pred_region
      _
    $region13: #{tpu_custom_call.1} parent=1 // pred_fallthru
      _
    // Predicated region
    $region14: #{tpu_custom_call.1} parent=1 // pred_check
      _
    $region15: #{tpu_custom_call.1} parent=1 // pred_check_branch
      %20 = sbr.rel (0) target = $region17
    $region16: #{tpu_custom_call.1} parent=1 // pred_region
      _
    $region17: #{tpu_custom_call.1} parent=1 // pred_fallthru
      _
    // Predicated region
    $region18: #{tpu_custom_call.1} parent=1 // pred_check
      _
    $region19: #{tpu_custom_call.1} parent=1 // pred_check_branch
      %22 = sbr.rel (0) target = $region21
    $region20: #{tpu_custom_call.1} parent=1 // pred_region
      _
    $region21: #{tpu_custom_call.1} parent=1 // pred_fallthru
      _
    // Predicated region
    $region22: #{tpu_custom_call.1} parent=1 // pred_check
      _
    $region23: #{tpu_custom_call.1} parent=1 // pred_check_branch
      %24 = sbr.rel (0) target = $region25
    $region24: #{tpu_custom_call.1} parent=1 // pred_region
      _
    $region25: #{tpu_custom_call.1} parent=1 // pred_fallthru
      _
    // Predicated region
    $region26: #{tpu_custom_call.1} parent=1 // pred_check
      _
    $region27: #{tpu_custom_call.1} parent=1 // pred_check_branch
      %26 = sbr.rel (0) target = $region29
    $region28: #{tpu_custom_call.1} parent=1 // pred_region
      _
    $region29: #{tpu_custom_call.1} parent=1 // pred_fallthru
      _
    %v28 = vld [vmem:[%s0] sm:$0xff]
    %v29 = vld [vmem:[%s0 + $0x8] sm:$0xff]
    %v30 = vld [vmem:[%s0 + $0x10] sm:$0xff]
    %v31 = vld [vmem:[%s0 + $0x18] sm:$0xff]
    %v32 = vld [vmem:[%s0 + $0x20] sm:$0xff]
    %v33 = vld [vmem:[%s0 + $0x28] sm:$0xff]
    %v34 = vld [vmem:[%s0 + $0x30] sm:$0xff]
    %v35 = vld [vmem:[%s0 + $0x38] sm:$0xff]
    %v36 = vld [vmem:[%s0 + $0x40] sm:$0xff]
    %v37 = vld [vmem:[%s0 + $0x48] sm:$0xff]
    %v38 = vld [vmem:[%s0 + $0x50] sm:$0xff]
    %v39 = vld [vmem:[%s0 + $0x58] sm:$0xff]
    %v40 = vld [vmem:[%s0 + $0x60] sm:$0xff]
    %v41 = vld [vmem:[%s0 + $0x68] sm:$0xff]
    %v42 = vld [vmem:[%s0 + $0x70] sm:$0xff]
    %v43 = vld [vmem:[%s0 + $0x78] sm:$0xff]
    %v44 = vld [vmem:[%s0 + $0x80] sm:$0xff]
    %v45 = vld [vmem:[%s0 + $0x88] sm:$0xff]
    %v46 = vld [vmem:[%s0 + $0x90] sm:$0xff]
    %v47 = vld [vmem:[%s0 + $0x98] sm:$0xff]
    %v48 = vld [vmem:[%s0 + $0xa0] sm:$0xff]
    %v49 = vld [vmem:[%s0 + $0xa8] sm:$0xff]
    %v50 = vld [vmem:[%s0 + $0xb0] sm:$0xff]
    %v51 = vld [vmem:[%s0 + $0xb8] sm:$0xff]
    %v52 = vld [vmem:[%s0 + $0xc0] sm:$0xff]
    %v53 = vld [vmem:[%s0 + $0xc8] sm:$0xff]
    %v54 = vld [vmem:[%s0 + $0xd0] sm:$0xff]
    %v55 = vld [vmem:[%s0 + $0xd8] sm:$0xff]
    %v56 = vld [vmem:[%s0 + $0xe0] sm:$0xff]
    %v57 = vld [vmem:[%s0 + $0xe8] sm:$0xff]
    %v58 = vld [vmem:[%s0 + $0xf0] sm:$0xff]
    %v59 = vld [vmem:[%s0 + $0xf8] sm:$0xff]
    %v60 = vld [vmem:[%s0 + $0x100] sm:$0xff]
    %v61 = vld [vmem:[%s0 + $0x108] sm:$0xff]
    %v62 = vld [vmem:[%s0 + $0x110] sm:$0xff]
    %v63 = vld [vmem:[%s0 + $0x118] sm:$0xff]
    %v64 = vld [vmem:[%s0 + $0x120] sm:$0xff]
    %v65 = vld [vmem:[%s0 + $0x128] sm:$0xff]
    %v66 = vld [vmem:[%s0 + $0x130] sm:$0xff]
    %v67 = vld [vmem:[%s0 + $0x138] sm:$0xff]
    %v68 = vld [vmem:[%s0 + $0x140] sm:$0xff]
    %v69 = vld [vmem:[%s0 + $0x148] sm:$0xff]
    %v70 = vld [vmem:[%s0 + $0x150] sm:$0xff]
    %v71 = vld [vmem:[%s0 + $0x158] sm:$0xff]
    %v72 = vld [vmem:[%s0 + $0x160] sm:$0xff]
    %v73 = vld [vmem:[%s0 + $0x168] sm:$0xff]
    %v74 = vld [vmem:[%s0 + $0x170] sm:$0xff]
    %v75 = vld [vmem:[%s0 + $0x178] sm:$0xff]
    %v76 = vld [vmem:[%s0 + $0x180] sm:$0xff]
    %v77 = vld [vmem:[%s0 + $0x188] sm:$0xff]
    %v78 = vld [vmem:[%s0 + $0x190] sm:$0xff]
    %v79 = vld [vmem:[%s0 + $0x198] sm:$0xff]
    %v80 = vld [vmem:[%s0 + $0x1a0] sm:$0xff]
    %v81 = vld [vmem:[%s0 + $0x1a8] sm:$0xff]
    %v82 = vld [vmem:[%s0 + $0x1b0] sm:$0xff]
    %v83 = vld [vmem:[%s0 + $0x1b8] sm:$0xff]
    %v84 = vld [vmem:[%s0 + $0x1c0] sm:$0xff]
    %v85 = vld [vmem:[%s0 + $0x1c8] sm:$0xff]
    %v86 = vld [vmem:[%s0 + $0x1d0] sm:$0xff]
    %v87 = vld [vmem:[%s0 + $0x1d8] sm:$0xff]
    %v88 = vld [vmem:[%s0 + $0x1e0] sm:$0xff]
    %v89 = vld [vmem:[%s0 + $0x1e8] sm:$0xff]
    %v90 = vld [vmem:[%s0 + $0x1f0] sm:$0xff]
    %v91 = vld [vmem:[%s0 + $0x1f8] sm:$0xff]
    %v92 = vld [vmem:[%s0 + $0x200] sm:$0xff]
    %v93 = vld [vmem:[%s0 + $0x208] sm:$0xff]
    %v94 = vld [vmem:[%s0 + $0x210] sm:$0xff]
    %v95 = vld [vmem:[%s0 + $0x218] sm:$0xff]
    %v96 = vld [vmem:[%s0 + $0x220] sm:$0xff]
    %v97 = vld [vmem:[%s0 + $0x228] sm:$0xff]
    %v98 = vld [vmem:[%s0 + $0x230] sm:$0xff]
    %v99 = vld [vmem:[%s0 + $0x238] sm:$0xff]
    %v100 = vld [vmem:[%s0 + $0x240] sm:$0xff]
    %v101 = vld [vmem:[%s0 + $0x248] sm:$0xff]
    %v102 = vld [vmem:[%s0 + $0x250] sm:$0xff]
    %v103 = vld [vmem:[%s0 + $0x258] sm:$0xff]
    %v104 = vld [vmem:[%s0 + $0x260] sm:$0xff]
    %v105 = vld [vmem:[%s0 + $0x268] sm:$0xff]
    %v106 = vld [vmem:[%s0 + $0x270] sm:$0xff]
    %v107 = vld [vmem:[%s0 + $0x278] sm:$0xff]
    %v108 = vld [vmem:[%s0 + $0x280] sm:$0xff]
    %v109 = vld [vmem:[%s0 + $0x288] sm:$0xff]
    %v110 = vld [vmem:[%s0 + $0x290] sm:$0xff]
    %v111 = vld [vmem:[%s0 + $0x298] sm:$0xff]
    %v112 = vld [vmem:[%s0 + $0x2a0] sm:$0xff]
    %v113 = vld [vmem:[%s0 + $0x2a8] sm:$0xff]
    %v114 = vld [vmem:[%s0 + $0x2b0] sm:$0xff]
    %v115 = vld [vmem:[%s0 + $0x2b8] sm:$0xff]
    %v116 = vld [vmem:[%s0 + $0x2c0] sm:$0xff]
    %v117 = vld [vmem:[%s0 + $0x2c8] sm:$0xff]
    %v118 = vld [vmem:[%s0 + $0x2d0] sm:$0xff]
    %v119 = vld [vmem:[%s0 + $0x2d8] sm:$0xff]
    %v120 = vld [vmem:[%s0 + $0x2e0] sm:$0xff]
    %v121 = vld [vmem:[%s0 + $0x2e8] sm:$0xff]
    %v122 = vld [vmem:[%s0 + $0x2f0] sm:$0xff]
    %v123 = vld [vmem:[%s0 + $0x2f8] sm:$0xff]
    %v124 = vld [vmem:[%s0 + $0x300] sm:$0xff]
    %v125 = vld [vmem:[%s0 + $0x308] sm:$0xff]
    %v126 = vld [vmem:[%s0 + $0x310] sm:$0xff]
    %v127 = vld [vmem:[%s0 + $0x318] sm:$0xff]
    %v128 = vld [vmem:[%s0 + $0x320] sm:$0xff]
    %v129 = vld [vmem:[%s0 + $0x328] sm:$0xff]
    %v130 = vld [vmem:[%s0 + $0x330] sm:$0xff]
    %v131 = vld [vmem:[%s0 + $0x338] sm:$0xff]
    %v132 = vld [vmem:[%s0 + $0x340] sm:$0xff]
    %v133 = vld [vmem:[%s0 + $0x348] sm:$0xff]
    %v134 = vld [vmem:[%s0 + $0x350] sm:$0xff]
    %v135 = vld [vmem:[%s0 + $0x358] sm:$0xff]
    %v136 = vld [vmem:[%s0 + $0x360] sm:$0xff]
    %v137 = vld [vmem:[%s0 + $0x368] sm:$0xff]
    %v138 = vld [vmem:[%s0 + $0x370] sm:$0xff]
    %v139 = vld [vmem:[%s0 + $0x378] sm:$0xff]
    %v140 = vld [vmem:[%s0 + $0x380] sm:$0xff]
    %v141 = vld [vmem:[%s0 + $0x388] sm:$0xff]
    %v142 = vld [vmem:[%s0 + $0x390] sm:$0xff]
    %v143 = vld [vmem:[%s0 + $0x398] sm:$0xff]
    %v144 = vld [vmem:[%s0 + $0x3a0] sm:$0xff]
    %v145 = vld [vmem:[%s0 + $0x3a8] sm:$0xff]
    %v146 = vld [vmem:[%s0 + $0x3b0] sm:$0xff]
    %v147 = vld [vmem:[%s0 + $0x3b8] sm:$0xff]
    %v148 = vld [vmem:[%s0 + $0x3c0] sm:$0xff]
    %v149 = vld [vmem:[%s0 + $0x3c8] sm:$0xff]
    %v150 = vld [vmem:[%s0 + $0x3d0] sm:$0xff]
    %v151 = vld [vmem:[%s0 + $0x3d8] sm:$0xff]
    %v152 = vld [vmem:[%s0 + $0x3e0] sm:$0xff]
    %v153 = vld [vmem:[%s0 + $0x3e8] sm:$0xff]
    %v154 = vld [vmem:[%s0 + $0x3f0] sm:$0xff]
    %v155 = vld [vmem:[%s0 + $0x3f8] sm:$0xff]
    %v156 = vld [vmem:[%s0 + $0x400] sm:$0xff]
    %v157 = vld [vmem:[%s0 + $0x408] sm:$0xff]
    %v158 = vld [vmem:[%s0 + $0x410] sm:$0xff]
    %v159 = vld [vmem:[%s0 + $0x418] sm:$0xff]
    %v160 = vld [vmem:[%s0 + $0x420] sm:$0xff]
    %v161 = vld [vmem:[%s0 + $0x428] sm:$0xff]
    %v162 = vld [vmem:[%s0 + $0x430] sm:$0xff]
    %v163 = vld [vmem:[%s0 + $0x438] sm:$0xff]
    %v164 = vld [vmem:[%s0 + $0x440] sm:$0xff]
    %v165 = vld [vmem:[%s0 + $0x448] sm:$0xff]
    %v166 = vld [vmem:[%s0 + $0x450] sm:$0xff]
    %v167 = vld [vmem:[%s0 + $0x458] sm:$0xff]
    %v168 = vld [vmem:[%s0 + $0x460] sm:$0xff]
    %v169 = vld [vmem:[%s0 + $0x468] sm:$0xff]
    %v170 = vld [vmem:[%s0 + $0x470] sm:$0xff]
    %v171 = vld [vmem:[%s0 + $0x478] sm:$0xff]
    %v172 = vld [vmem:[%s0 + $0x480] sm:$0xff]
    %v173 = vld [vmem:[%s0 + $0x488] sm:$0xff]
    %v174 = vld [vmem:[%s0 + $0x490] sm:$0xff]
    %v175 = vld [vmem:[%s0 + $0x498] sm:$0xff]
    %v176 = vld [vmem:[%s0 + $0x4a0] sm:$0xff]
    %v177 = vld [vmem:[%s0 + $0x4a8] sm:$0xff]
    %v178 = vld [vmem:[%s0 + $0x4b0] sm:$0xff]
    %v179 = vld [vmem:[%s0 + $0x4b8] sm:$0xff]
    %v180 = vld [vmem:[%s0 + $0x4c0] sm:$0xff]
    %v181 = vld [vmem:[%s0 + $0x4c8] sm:$0xff]
    %v182 = vld [vmem:[%s0 + $0x4d0] sm:$0xff]
    %v183 = vld [vmem:[%s0 + $0x4d8] sm:$0xff]
    %v184 = vld [vmem:[%s0 + $0x4e0] sm:$0xff]
    %v185 = vld [vmem:[%s0 + $0x4e8] sm:$0xff]
    %v186 = vld [vmem:[%s0 + $0x4f0] sm:$0xff]
    %v187 = vld [vmem:[%s0 + $0x4f8] sm:$0xff]
    %v188 = vld [vmem:[%s0 + $0x500] sm:$0xff]
    %v189 = vld [vmem:[%s0 + $0x508] sm:$0xff]
    %v190 = vld [vmem:[%s0 + $0x510] sm:$0xff]
    %v191 = vld [vmem:[%s0 + $0x518] sm:$0xff]
    %v192 = vld [vmem:[%s0 + $0x520] sm:$0xff]
    %v193 = vld [vmem:[%s0 + $0x528] sm:$0xff]
    %v194 = vld [vmem:[%s0 + $0x530] sm:$0xff]
    %v195 = vld [vmem:[%s0 + $0x538] sm:$0xff]
    %v196 = vld [vmem:[%s0 + $0x540] sm:$0xff]
    %v197 = vld [vmem:[%s0 + $0x548] sm:$0xff]
    %v198 = vld [vmem:[%s0 + $0x550] sm:$0xff]
    %v199 = vld [vmem:[%s0 + $0x558] sm:$0xff]
    %v200 = vld [vmem:[%s0 + $0x560] sm:$0xff]
    %v201 = vld [vmem:[%s0 + $0x568] sm:$0xff]
    %v202 = vld [vmem:[%s0 + $0x570] sm:$0xff]
    %v203 = vld [vmem:[%s0 + $0x578] sm:$0xff]
    %v204 = vld [vmem:[%s0 + $0x580] sm:$0xff]
    %v205 = vld [vmem:[%s0 + $0x588] sm:$0xff]
    %v206 = vld [vmem:[%s0 + $0x590] sm:$0xff]
    %v207 = vld [vmem:[%s0 + $0x598] sm:$0xff]
    %v208 = vld [vmem:[%s0 + $0x5a0] sm:$0xff]
    %v209 = vld [vmem:[%s0 + $0x5a8] sm:$0xff]
    %v210 = vld [vmem:[%s0 + $0x5b0] sm:$0xff]
    %v211 = vld [vmem:[%s0 + $0x5b8] sm:$0xff]
    %v212 = vld [vmem:[%s0 + $0x5c0] sm:$0xff]
    %v213 = vld [vmem:[%s0 + $0x5c8] sm:$0xff]
    %v214 = vld [vmem:[%s0 + $0x5d0] sm:$0xff]
    %v215 = vld [vmem:[%s0 + $0x5d8] sm:$0xff]
    %v216 = vld [vmem:[%s0 + $0x5e0] sm:$0xff]
    %v217 = vld [vmem:[%s0 + $0x5e8] sm:$0xff]
    %v218 = vld [vmem:[%s0 + $0x5f0] sm:$0xff]
    %v219 = vld [vmem:[%s0 + $0x5f8] sm:$0xff]
    %v220 = vld [vmem:[%s0 + $0x600] sm:$0xff]
    %v221 = vld [vmem:[%s0 + $0x608] sm:$0xff]
    %v222 = vld [vmem:[%s0 + $0x610] sm:$0xff]
    %v223 = vld [vmem:[%s0 + $0x618] sm:$0xff]
    %v224 = vld [vmem:[%s0 + $0x620] sm:$0xff]
    %v225 = vld [vmem:[%s0 + $0x628] sm:$0xff]
    %v226 = vld [vmem:[%s0 + $0x630] sm:$0xff]
    %v227 = vld [vmem:[%s0 + $0x638] sm:$0xff]
    %v228 = vld [vmem:[%s0 + $0x640] sm:$0xff]
    %v229 = vld [vmem:[%s0 + $0x648] sm:$0xff]
    %v230 = vld [vmem:[%s0 + $0x650] sm:$0xff]
    %v231 = vld [vmem:[%s0 + $0x658] sm:$0xff]
    %v232 = vld [vmem:[%s0 + $0x660] sm:$0xff]
    %v233 = vld [vmem:[%s0 + $0x668] sm:$0xff]
    %v234 = vld [vmem:[%s0 + $0x670] sm:$0xff]
    %v235 = vld [vmem:[%s0 + $0x678] sm:$0xff]
    %v236 = vld [vmem:[%s0 + $0x680] sm:$0xff]
    %v237 = vld [vmem:[%s0 + $0x688] sm:$0xff]
    %v238 = vld [vmem:[%s0 + $0x690] sm:$0xff]
    %v239 = vld [vmem:[%s0 + $0x698] sm:$0xff]
    %v240 = vld [vmem:[%s0 + $0x6a0] sm:$0xff]
    %v241 = vld [vmem:[%s0 + $0x6a8] sm:$0xff]
    %v242 = vld [vmem:[%s0 + $0x6b0] sm:$0xff]
    %v243 = vld [vmem:[%s0 + $0x6b8] sm:$0xff]
    %v244 = vld [vmem:[%s0 + $0x6c0] sm:$0xff]
    %v245 = vld [vmem:[%s0 + $0x6c8] sm:$0xff]
    %v246 = vld [vmem:[%s0 + $0x6d0] sm:$0xff]
    %v247 = vld [vmem:[%s0 + $0x6d8] sm:$0xff]
    %v248 = vld [vmem:[%s0 + $0x6e0] sm:$0xff]
    %v249 = vld [vmem:[%s0 + $0x6e8] sm:$0xff]
    %v250 = vld [vmem:[%s0 + $0x6f0] sm:$0xff]
    %v251 = vld [vmem:[%s0 + $0x6f8] sm:$0xff]
    %v252 = vpack.c.bf16 %v35, %v28
    %v253 = vpack.c.bf16 %v36, %v29
    %v254 = vpack.c.bf16 %v37, %v30
    %v255 = vpack.c.bf16 %v38, %v31
    %v256 = vpack.c.bf16 %v39, %v32
    %v257 = vpack.c.bf16 %v40, %v33
    %v258 = vpack.c.bf16 %v41, %v34
    %v259 = vpack.c.bf16 %v49, %v42
    %v260 = vpack.c.bf16 %v50, %v43
    %v261 = vpack.c.bf16 %v51, %v44
    %v262 = vpack.c.bf16 %v52, %v45
    %v263 = vpack.c.bf16 %v53, %v46
    %v264 = vpack.c.bf16 %v54, %v47
    %v265 = vpack.c.bf16 %v55, %v48
    %v266 = vpack.c.bf16 %v63, %v56
    %v267 = vpack.c.bf16 %v64, %v57
    %v268 = vpack.c.bf16 %v65, %v58
    %v269 = vpack.c.bf16 %v66, %v59
    %v270 = vpack.c.bf16 %v67, %v60
    %v271 = vpack.c.bf16 %v68, %v61
    %v272 = vpack.c.bf16 %v69, %v62
    %v273 = vpack.c.bf16 %v77, %v70
    %v274 = vpack.c.bf16 %v78, %v71
    %v275 = vpack.c.bf16 %v79, %v72
    %v276 = vpack.c.bf16 %v80, %v73
    %v277 = vpack.c.bf16 %v81, %v74
    %v278 = vpack.c.bf16 %v82, %v75
    %v279 = vpack.c.bf16 %v83, %v76
    %v280 = vpack.c.bf16 %v91, %v84
    %v281 = vpack.c.bf16 %v92, %v85
    %v282 = vpack.c.bf16 %v93, %v86
    %v283 = vpack.c.bf16 %v94, %v87
    %v284 = vpack.c.bf16 %v95, %v88
    %v285 = vpack.c.bf16 %v96, %v89
    %v286 = vpack.c.bf16 %v97, %v90
    %v287 = vpack.c.bf16 %v105, %v98
    %v288 = vpack.c.bf16 %v106, %v99
    %v289 = vpack.c.bf16 %v107, %v100
    %v290 = vpack.c.bf16 %v108, %v101
    %v291 = vpack.c.bf16 %v109, %v102
    %v292 = vpack.c.bf16 %v110, %v103
    %v293 = vpack.c.bf16 %v111, %v104
    %v294 = vpack.c.bf16 %v119, %v112
    %v295 = vpack.c.bf16 %v120, %v113
    %v296 = vpack.c.bf16 %v121, %v114
    %v297 = vpack.c.bf16 %v122, %v115
    %v298 = vpack.c.bf16 %v123, %v116
    %v299 = vpack.c.bf16 %v124, %v117
    %v300 = vpack.c.bf16 %v125, %v118
    %v301 = vpack.c.bf16 %v133, %v126
    %v302 = vpack.c.bf16 %v134, %v127
    %v303 = vpack.c.bf16 %v135, %v128
    %v304 = vpack.c.bf16 %v136, %v129
    %v305 = vpack.c.bf16 %v137, %v130
    %v306 = vpack.c.bf16 %v138, %v131
    %v307 = vpack.c.bf16 %v139, %v132
    %v308 = vpack.c.bf16 %v147, %v140
    %v309 = vpack.c.bf16 %v148, %v141
    %v310 = vpack.c.bf16 %v149, %v142
    %v311 = vpack.c.bf16 %v150, %v143
    %v312 = vpack.c.bf16 %v151, %v144
    %v313 = vpack.c.bf16 %v152, %v145
    %v314 = vpack.c.bf16 %v153, %v146
    %v315 = vpack.c.bf16 %v161, %v154
    %v316 = vpack.c.bf16 %v162, %v155
    %v317 = vpack.c.bf16 %v163, %v156
    %v318 = vpack.c.bf16 %v164, %v157
    %v319 = vpack.c.bf16 %v165, %v158
    %v320 = vpack.c.bf16 %v166, %v159
    %v321 = vpack.c.bf16 %v167, %v160
    %v322 = vpack.c.bf16 %v175, %v168
    %v323 = vpack.c.bf16 %v176, %v169
    %v324 = vpack.c.bf16 %v177, %v170
    %v325 = vpack.c.bf16 %v178, %v171
    %v326 = vpack.c.bf16 %v179, %v172
    %v327 = vpack.c.bf16 %v180, %v173
    %v328 = vpack.c.bf16 %v181, %v174
    %v329 = vpack.c.bf16 %v189, %v182
    %v330 = vpack.c.bf16 %v190, %v183
    %v331 = vpack.c.bf16 %v191, %v184
    %v332 = vpack.c.bf16 %v192, %v185
    %v333 = vpack.c.bf16 %v193, %v186
    %v334 = vpack.c.bf16 %v194, %v187
    %v335 = vpack.c.bf16 %v195, %v188
    %v336 = vpack.c.bf16 %v203, %v196
    %v337 = vpack.c.bf16 %v204, %v197
    %v338 = vpack.c.bf16 %v205, %v198
    %v339 = vpack.c.bf16 %v206, %v199
    %v340 = vpack.c.bf16 %v207, %v200
    %v341 = vpack.c.bf16 %v208, %v201
    %v342 = vpack.c.bf16 %v209, %v202
    %v343 = vpack.c.bf16 %v217, %v210
    %v344 = vpack.c.bf16 %v218, %v211
    %v345 = vpack.c.bf16 %v219, %v212
    %v346 = vpack.c.bf16 %v220, %v213
    %v347 = vpack.c.bf16 %v221, %v214
    %v348 = vpack.c.bf16 %v222, %v215
    %v349 = vpack.c.bf16 %v223, %v216
    %v350 = vpack.c.bf16 %v231, %v224
    %v351 = vpack.c.bf16 %v232, %v225
    %v352 = vpack.c.bf16 %v233, %v226
    %v353 = vpack.c.bf16 %v234, %v227
    %v354 = vpack.c.bf16 %v235, %v228
    %v355 = vpack.c.bf16 %v236, %v229
    %v356 = vpack.c.bf16 %v237, %v230
    %v357 = vpack.c.bf16 %v245, %v238
    %v358 = vpack.c.bf16 %v246, %v239
    %v359 = vpack.c.bf16 %v247, %v240
    %v360 = vpack.c.bf16 %v248, %v241
    %v361 = vpack.c.bf16 %v249, %v242
    %v362 = vpack.c.bf16 %v250, %v243
    %v363 = vpack.c.bf16 %v251, %v244
    %v364 = vld [vmem:[%s1] sm:$0xf]
    %v365 = vld [vmem:[%s1 + $0x4] sm:$0xf]
    %v366 = vld [vmem:[%s1 + $0x8] sm:$0xf]
    %v367 = vld [vmem:[%s1 + $0xc] sm:$0xf]
    %v368 = vld [vmem:[%s1 + $0x10] sm:$0xf]
    %v369 = vld [vmem:[%s1 + $0x14] sm:$0xf]
    %v370 = vld [vmem:[%s1 + $0x18] sm:$0xf]
    %v371 = vld [vmem:[%s1 + $0x1c] sm:$0xf]
    %v372 = vld [vmem:[%s1 + $0x20] sm:$0xf]
    %v373 = vld [vmem:[%s1 + $0x24] sm:$0xf]
    %v374 = vld [vmem:[%s1 + $0x28] sm:$0xf]
    %v375 = vld [vmem:[%s1 + $0x2c] sm:$0xf]
    %v376 = vld [vmem:[%s1 + $0x30] sm:$0xf]
    %v377 = vld [vmem:[%s1 + $0x34] sm:$0xf]
    %v378 = vld [vmem:[%s1 + $0x38] sm:$0xf]
    %v379 = vld [vmem:[%s1 + $0x3c] sm:$0xf]
    %v380 = vld [vmem:[%s1 + $0x40] sm:$0xf]
    %v381 = vld [vmem:[%s1 + $0x44] sm:$0xf]
    %v382 = vld [vmem:[%s1 + $0x48] sm:$0xf]
    %v383 = vld [vmem:[%s1 + $0x4c] sm:$0xf]
    %v384 = vld [vmem:[%s1 + $0x50] sm:$0xf]
    %v385 = vld [vmem:[%s1 + $0x54] sm:$0xf]
    %v386 = vld [vmem:[%s1 + $0x58] sm:$0xf]
    %v387 = vld [vmem:[%s1 + $0x5c] sm:$0xf]
    %v388 = vld [vmem:[%s1 + $0x60] sm:$0xf]
    %v389 = vld [vmem:[%s1 + $0x64] sm:$0xf]
    %v390 = vld [vmem:[%s1 + $0x68] sm:$0xf]
    %v391 = vld [vmem:[%s1 + $0x6c] sm:$0xf]
    %v392 = vld [vmem:[%s1 + $0x70] sm:$0xf]
    %v393 = vld [vmem:[%s1 + $0x74] sm:$0xf]
    %v394 = vld [vmem:[%s1 + $0x78] sm:$0xf]
    %v395 = vld [vmem:[%s1 + $0x7c] sm:$0xf]
    %v396 = vld [vmem:[%s1 + $0x80] sm:$0xf]
    %v397 = vld [vmem:[%s1 + $0x84] sm:$0xf]
    %v398 = vld [vmem:[%s1 + $0x88] sm:$0xf]
    %v399 = vld [vmem:[%s1 + $0x8c] sm:$0xf]
    %v400 = vld [vmem:[%s1 + $0x90] sm:$0xf]
    %v401 = vld [vmem:[%s1 + $0x94] sm:$0xf]
    %v402 = vld [vmem:[%s1 + $0x98] sm:$0xf]
    %v403 = vld [vmem:[%s1 + $0x9c] sm:$0xf]
    %v404 = vld [vmem:[%s1 + $0xa0] sm:$0xf]
    %v405 = vld [vmem:[%s1 + $0xa4] sm:$0xf]
    %v406 = vld [vmem:[%s1 + $0xa8] sm:$0xf]
    %v407 = vld [vmem:[%s1 + $0xac] sm:$0xf]
    %v408 = vld [vmem:[%s1 + $0xb0] sm:$0xf]
    %v409 = vld [vmem:[%s1 + $0xb4] sm:$0xf]
    %v410 = vld [vmem:[%s1 + $0xb8] sm:$0xf]
    %v411 = vld [vmem:[%s1 + $0xbc] sm:$0xf]
    %v412 = vld [vmem:[%s1 + $0xc0] sm:$0xf]
    %v413 = vld [vmem:[%s1 + $0xc4] sm:$0xf]
    %v414 = vld [vmem:[%s1 + $0xc8] sm:$0xf]
    %v415 = vld [vmem:[%s1 + $0xcc] sm:$0xf]
    %v416 = vld [vmem:[%s1 + $0xd0] sm:$0xf]
    %v417 = vld [vmem:[%s1 + $0xd4] sm:$0xf]
    %v418 = vld [vmem:[%s1 + $0xd8] sm:$0xf]
    %v419 = vld [vmem:[%s1 + $0xdc] sm:$0xf]
    %v420 = vld [vmem:[%s1 + $0xe0] sm:$0xf]
    %v421 = vld [vmem:[%s1 + $0xe4] sm:$0xf]
    %v422 = vld [vmem:[%s1 + $0xe8] sm:$0xf]
    %v423 = vld [vmem:[%s1 + $0xec] sm:$0xf]
    %v424 = vld [vmem:[%s1 + $0xf0] sm:$0xf]
    %v425 = vld [vmem:[%s1 + $0xf4] sm:$0xf]
    %v426 = vld [vmem:[%s1 + $0xf8] sm:$0xf]
    %v427 = vld [vmem:[%s1 + $0xfc] sm:$0xf]
    %v428 = vld [vmem:[%s1 + $0x100] sm:$0xf]
    %v429 = vld [vmem:[%s1 + $0x104] sm:$0xf]
    %v430 = vld [vmem:[%s1 + $0x108] sm:$0xf]
    %v431 = vld [vmem:[%s1 + $0x10c] sm:$0xf]
    %v432 = vld [vmem:[%s1 + $0x110] sm:$0xf]
    %v433 = vld [vmem:[%s1 + $0x114] sm:$0xf]
    %v434 = vld [vmem:[%s1 + $0x118] sm:$0xf]
    %v435 = vld [vmem:[%s1 + $0x11c] sm:$0xf]
    %v436 = vld [vmem:[%s1 + $0x120] sm:$0xf]
    %v437 = vld [vmem:[%s1 + $0x124] sm:$0xf]
    %v438 = vld [vmem:[%s1 + $0x128] sm:$0xf]
    %v439 = vld [vmem:[%s1 + $0x12c] sm:$0xf]
    %v440 = vld [vmem:[%s1 + $0x130] sm:$0xf]
    %v441 = vld [vmem:[%s1 + $0x134] sm:$0xf]
    %v442 = vld [vmem:[%s1 + $0x138] sm:$0xf]
    %v443 = vld [vmem:[%s1 + $0x13c] sm:$0xf]
    %v444 = vld [vmem:[%s1 + $0x140] sm:$0xf]
    %v445 = vld [vmem:[%s1 + $0x144] sm:$0xf]
    %v446 = vld [vmem:[%s1 + $0x148] sm:$0xf]
    %v447 = vld [vmem:[%s1 + $0x14c] sm:$0xf]
    %v448 = vld [vmem:[%s1 + $0x150] sm:$0xf]
    %v449 = vld [vmem:[%s1 + $0x154] sm:$0xf]
    %v450 = vld [vmem:[%s1 + $0x158] sm:$0xf]
    %v451 = vld [vmem:[%s1 + $0x15c] sm:$0xf]
    %v452 = vld [vmem:[%s1 + $0x160] sm:$0xf]
    %v453 = vld [vmem:[%s1 + $0x164] sm:$0xf]
    %v454 = vld [vmem:[%s1 + $0x168] sm:$0xf]
    %v455 = vld [vmem:[%s1 + $0x16c] sm:$0xf]
    %v456 = vld [vmem:[%s1 + $0x170] sm:$0xf]
    %v457 = vld [vmem:[%s1 + $0x174] sm:$0xf]
    %v458 = vld [vmem:[%s1 + $0x178] sm:$0xf]
    %v459 = vld [vmem:[%s1 + $0x17c] sm:$0xf]
    %v460 = vld [vmem:[%s1 + $0x180] sm:$0xf]
    %v461 = vld [vmem:[%s1 + $0x184] sm:$0xf]
    %v462 = vld [vmem:[%s2] sm:$0x1]
    %v464 = vlaneseq
    %v465 = vshrl.u32 %v464, 7
    %v466 = vsub.s32 0, %v465
    %v467 = vrot.slane %v462, %v466
    %v567 = vunpack.c.l.b16 %v364
    %v568 = vunpack.c.l.b16 %v365
    %v569 = vunpack.c.l.b16 %v366
    %v570 = vunpack.c.l.b16 %v367
    %v571 = vunpack.c.l.b16 %v368
    %v572 = vunpack.c.l.b16 %v369
    %v573 = vunpack.c.l.b16 %v370
    %v574 = vunpack.c.l.b16 %v371
    %v575 = vunpack.c.l.b16 %v372
    %v576 = vunpack.c.l.b16 %v373
    %v577 = vunpack.c.l.b16 %v374
    %v578 = vunpack.c.l.b16 %v375
    %v579 = vunpack.c.l.b16 %v376
    %v580 = vunpack.c.l.b16 %v377
    %v581 = vunpack.c.l.b16 %v378
    %v582 = vunpack.c.l.b16 %v379
    %v583 = vunpack.c.l.b16 %v380
    %v584 = vunpack.c.l.b16 %v381
    %v585 = vunpack.c.l.b16 %v382
    %v586 = vunpack.c.l.b16 %v383
    %v587 = vunpack.c.l.b16 %v384
    %v588 = vunpack.c.l.b16 %v385
    %v589 = vunpack.c.l.b16 %v386
    %v590 = vunpack.c.l.b16 %v387
    %v591 = vunpack.c.l.b16 %v388
    %v592 = vunpack.c.l.b16 %v389
    %v593 = vunpack.c.l.b16 %v390
    %v594 = vunpack.c.l.b16 %v391
    %v595 = vunpack.c.l.b16 %v392
    %v596 = vunpack.c.l.b16 %v393
    %v597 = vunpack.c.l.b16 %v394
    %v598 = vunpack.c.l.b16 %v395
    %v599 = vunpack.c.l.b16 %v396
    %v600 = vunpack.c.l.b16 %v397
    %v601 = vunpack.c.l.b16 %v398
    %v602 = vunpack.c.l.b16 %v399
    %v603 = vunpack.c.l.b16 %v400
    %v604 = vunpack.c.l.b16 %v401
    %v605 = vunpack.c.l.b16 %v402
    %v606 = vunpack.c.l.b16 %v403
    %v607 = vunpack.c.l.b16 %v404
    %v608 = vunpack.c.l.b16 %v405
    %v609 = vunpack.c.l.b16 %v406
    %v610 = vunpack.c.l.b16 %v407
    %v611 = vunpack.c.l.b16 %v408
    %v612 = vunpack.c.l.b16 %v409
    %v613 = vunpack.c.l.b16 %v410
    %v614 = vunpack.c.l.b16 %v411
    %v615 = vunpack.c.l.b16 %v412
    %v616 = vunpack.c.l.b16 %v413
    %v617 = vunpack.c.l.b16 %v414
    %v618 = vunpack.c.l.b16 %v415
    %v619 = vunpack.c.l.b16 %v416
    %v620 = vunpack.c.l.b16 %v417
    %v621 = vunpack.c.l.b16 %v418
    %v622 = vunpack.c.l.b16 %v419
    %v623 = vunpack.c.l.b16 %v420
    %v624 = vunpack.c.l.b16 %v421
    %v625 = vunpack.c.l.b16 %v422
    %v626 = vunpack.c.l.b16 %v423
    %v627 = vunpack.c.l.b16 %v424
    %v628 = vunpack.c.l.b16 %v425
    %v629 = vunpack.c.l.b16 %v426
    %v630 = vunpack.c.l.b16 %v427
    %v631 = vunpack.c.l.b16 %v428
    %v632 = vunpack.c.l.b16 %v429
    %v633 = vunpack.c.l.b16 %v430
    %v634 = vunpack.c.l.b16 %v431
    %v635 = vunpack.c.l.b16 %v432
    %v636 = vunpack.c.l.b16 %v433
    %v637 = vunpack.c.l.b16 %v434
    %v638 = vunpack.c.l.b16 %v435
    %v639 = vunpack.c.l.b16 %v436
    %v640 = vunpack.c.l.b16 %v437
    %v641 = vunpack.c.l.b16 %v438
    %v642 = vunpack.c.l.b16 %v439
    %v643 = vunpack.c.l.b16 %v440
    %v644 = vunpack.c.l.b16 %v441
    %v645 = vunpack.c.l.b16 %v442
    %v646 = vunpack.c.l.b16 %v443
    %v647 = vunpack.c.l.b16 %v444
    %v648 = vunpack.c.l.b16 %v445
    %v649 = vunpack.c.l.b16 %v446
    %v650 = vunpack.c.l.b16 %v447
    %v651 = vunpack.c.l.b16 %v448
    %v652 = vunpack.c.l.b16 %v449
    %v653 = vunpack.c.l.b16 %v450
    %v654 = vunpack.c.l.b16 %v451
    %v655 = vunpack.c.l.b16 %v452
    %v656 = vunpack.c.l.b16 %v453
    %v657 = vunpack.c.l.b16 %v454
    %v658 = vunpack.c.l.b16 %v455
    %v659 = vunpack.c.l.b16 %v456
    %v660 = vunpack.c.l.b16 %v457
    %v661 = vunpack.c.l.b16 %v458
    %v662 = vunpack.c.l.b16 %v459
    %v663 = vunpack.c.l.b16 %v460
    %v664 = vunpack.c.l.b16 %v461
    %v665 = vpack.c.b16 %v568, %v567
    %v666 = vpack.c.b16 %v570, %v569
    %v667 = vpack.c.b16 %v572, %v571
    %v668 = vpack.c.b16 %v574, %v573
    %v669 = vpack.c.b16 %v576, %v575
    %v670 = vpack.c.b16 %v578, %v577
    %v671 = vpack.c.b16 %v580, %v579
    %v672 = vpack.c.b16 %v582, %v581
    %v673 = vpack.c.b16 %v584, %v583
    %v674 = vpack.c.b16 %v586, %v585
    %v675 = vpack.c.b16 %v588, %v587
    %v676 = vpack.c.b16 %v590, %v589
    %v677 = vpack.c.b16 %v592, %v591
    %v678 = vpack.c.b16 %v594, %v593
    %v679 = vpack.c.b16 %v596, %v595
    %v680 = vpack.c.b16 %v598, %v597
    %v681 = vpack.c.b16 %v600, %v599
    %v682 = vpack.c.b16 %v602, %v601
    %v683 = vpack.c.b16 %v604, %v603
    %v684 = vpack.c.b16 %v606, %v605
    %v685 = vpack.c.b16 %v608, %v607
    %v686 = vpack.c.b16 %v610, %v609
    %v687 = vpack.c.b16 %v612, %v611
    %v688 = vpack.c.b16 %v614, %v613
    %v689 = vpack.c.b16 %v616, %v615
    %v690 = vpack.c.b16 %v618, %v617
    %v691 = vpack.c.b16 %v620, %v619
    %v692 = vpack.c.b16 %v622, %v621
    %v693 = vpack.c.b16 %v624, %v623
    %v694 = vpack.c.b16 %v626, %v625
    %v695 = vpack.c.b16 %v628, %v627
    %v696 = vpack.c.b16 %v630, %v629
    %v697 = vpack.c.b16 %v632, %v631
    %v698 = vpack.c.b16 %v634, %v633
    %v699 = vpack.c.b16 %v636, %v635
    %v700 = vpack.c.b16 %v638, %v637
    %v701 = vpack.c.b16 %v640, %v639
    %v702 = vpack.c.b16 %v642, %v641
    %v703 = vpack.c.b16 %v644, %v643
    %v704 = vpack.c.b16 %v646, %v645
    %v705 = vpack.c.b16 %v648, %v647
    %v706 = vpack.c.b16 %v650, %v649
    %v707 = vpack.c.b16 %v652, %v651
    %v708 = vpack.c.b16 %v654, %v653
    %v709 = vpack.c.b16 %v656, %v655
    %v710 = vpack.c.b16 %v658, %v657
    %v711 = vpack.c.b16 %v660, %v659
    %v712 = vpack.c.b16 %v662, %v661
    %v713 = vpack.c.b16 %v664, %v663
    %vm763 = vcmask 130048
    %v765 = vsel %vm763, %v258, 0
    %v768 = vsel %vm763, %v265, 0
    %v771 = vsel %vm763, %v272, 0
    %v774 = vsel %vm763, %v279, 0
    %v777 = vsel %vm763, %v286, 0
    %v780 = vsel %vm763, %v293, 0
    %v783 = vsel %vm763, %v300, 0
    %v786 = vsel %vm763, %v307, 0
    %v789 = vsel %vm763, %v314, 0
    %v792 = vsel %vm763, %v321, 0
    %v795 = vsel %vm763, %v328, 0
    %v798 = vsel %vm763, %v335, 0
    %v801 = vsel %vm763, %v342, 0
    %v804 = vsel %vm763, %v349, 0
    %v807 = vsel %vm763, %v356, 0
    %v810 = vsel %vm763, %v363, 0
    %812 = vmatprep.subr.bf16.mxu0 0
    %813 = vmatpush1.bf16.msra.mxu0 %v672
    %814 = vmatprep.subr.bf16.mxu0 0
    %815 = vmatpush1.bf16.msra.mxu0 %v671
    %816 = vmatprep.subr.bf16.mxu0 0
    %817 = vmatpush1.bf16.msra.mxu0 %v670
    %818 = vmatprep.subr.bf16.mxu0 0
    %819 = vmatpush1.bf16.msra.mxu0 %v669
    %820 = vmatprep.subr.bf16.mxu0 0
    %821 = vmatpush1.bf16.msra.mxu0 %v668
    %822 = vmatprep.subr.bf16.mxu0 0
    %823 = vmatpush1.bf16.msra.mxu0 %v667
    %824 = vmatprep.subr.bf16.mxu0 0
    %825 = vmatpush1.bf16.msra.mxu0 %v666
    %826 = vmatprep.subr.bf16.mxu0 0
    %827 = vmatpush1.bf16.msra.mxu0 %v665
    %828 = vmatprep.subr.bf16.mxu0 0
    %829 = vmatpush2.bf16.msra.mxu0 %v680
    %830 = vmatprep.subr.bf16.mxu0 0
    %831 = vmatpush2.bf16.msra.mxu0 %v679
    %832 = vmatprep.subr.bf16.mxu0 0
    %833 = vmatpush2.bf16.msra.mxu0 %v678
    %834 = vmatprep.subr.bf16.mxu0 0
    %835 = vmatpush2.bf16.msra.mxu0 %v677
    %836 = vmatprep.subr.bf16.mxu0 0
    %837 = vmatpush2.bf16.msra.mxu0 %v676
    %838 = vmatprep.subr.bf16.mxu0 0
    %839 = vmatpush2.bf16.msra.mxu0 %v675
    %840 = vmatprep.subr.bf16.mxu0 0
    %841 = vmatpush2.bf16.msra.mxu0 %v674
    %842 = vmatprep.subr.bf16.mxu0 0
    %843 = vmatpush2.bf16.msra.mxu0 %v673
    %844 = vmatprep.mubr.bf16.mxu0 %v253
    %845 = vmatmul.mubr.bf16.gmra.mxu0 %v252
    %v846 = vpop.f32.mrf.mxu0
    %v847 = vadd.f32 %v467, %v846
    %v848 = vpop.f32.mrf.mxu0
    %v849 = vpop.f32.mrf.mxu0
    %v850 = vadd.f32 %v467, %v849
    %v851 = vpop.f32.mrf.mxu0
    %852 = vmatprep.mubr.bf16.mxu0 %v260
    %853 = vmatmul.mubr.bf16.gmra.mxu0 %v259
    %v854 = vpop.f32.mrf.mxu0
    %v855 = vadd.f32 %v467, %v854
    %v856 = vpop.f32.mrf.mxu0
    %v857 = vpop.f32.mrf.mxu0
    %v858 = vadd.f32 %v467, %v857
    %v859 = vpop.f32.mrf.mxu0
    %860 = vmatprep.mubr.bf16.mxu0 %v267
    %861 = vmatmul.mubr.bf16.gmra.mxu0 %v266
    %v862 = vpop.f32.mrf.mxu0
    %v863 = vadd.f32 %v467, %v862
    %v864 = vpop.f32.mrf.mxu0
    %v865 = vpop.f32.mrf.mxu0
    %v866 = vadd.f32 %v467, %v865
    %v867 = vpop.f32.mrf.mxu0
    %868 = vmatprep.mubr.bf16.mxu0 %v274
    %869 = vmatmul.mubr.bf16.gmra.mxu0 %v273
    %v870 = vpop.f32.mrf.mxu0
    %v871 = vadd.f32 %v467, %v870
    %v872 = vpop.f32.mrf.mxu0
    %v873 = vpop.f32.mrf.mxu0
    %v874 = vadd.f32 %v467, %v873
    %v875 = vpop.f32.mrf.mxu0
    %876 = vmatprep.mubr.bf16.mxu0 %v281
    %877 = vmatmul.mubr.bf16.gmra.mxu0 %v280
    %v878 = vpop.f32.mrf.mxu0
    %v879 = vadd.f32 %v467, %v878
    %v880 = vpop.f32.mrf.mxu0
    %v881 = vpop.f32.mrf.mxu0
    %v882 = vadd.f32 %v467, %v881
    %v883 = vpop.f32.mrf.mxu0
    %884 = vmatprep.mubr.bf16.mxu0 %v288
    %885 = vmatmul.mubr.bf16.gmra.mxu0 %v287
    %v886 = vpop.f32.mrf.mxu0
    %v887 = vadd.f32 %v467, %v886
    %v888 = vpop.f32.mrf.mxu0
    %v889 = vpop.f32.mrf.mxu0
    %v890 = vadd.f32 %v467, %v889
    %v891 = vpop.f32.mrf.mxu0
    %892 = vmatprep.mubr.bf16.mxu0 %v295
    %893 = vmatmul.mubr.bf16.gmra.mxu0 %v294
    %v894 = vpop.f32.mrf.mxu0
    %v895 = vadd.f32 %v467, %v894
    %v896 = vpop.f32.mrf.mxu0
    %v897 = vpop.f32.mrf.mxu0
    %v898 = vadd.f32 %v467, %v897
    %v899 = vpop.f32.mrf.mxu0
    %900 = vmatprep.mubr.bf16.mxu0 %v302
    %901 = vmatmul.mubr.bf16.gmra.mxu0 %v301
    %v902 = vpop.f32.mrf.mxu0
    %v903 = vadd.f32 %v467, %v902
    %v904 = vpop.f32.mrf.mxu0
    %v905 = vpop.f32.mrf.mxu0
    %v906 = vadd.f32 %v467, %v905
    %v907 = vpop.f32.mrf.mxu0
    %908 = vmatprep.mubr.bf16.mxu0 %v309
    %909 = vmatmul.mubr.bf16.gmra.mxu0 %v308
    %v910 = vpop.f32.mrf.mxu0
    %v911 = vadd.f32 %v467, %v910
    %v912 = vpop.f32.mrf.mxu0
    %v913 = vpop.f32.mrf.mxu0
    %v914 = vadd.f32 %v467, %v913
    %v915 = vpop.f32.mrf.mxu0
    %916 = vmatprep.mubr.bf16.mxu0 %v316
    %917 = vmatmul.mubr.bf16.gmra.mxu0 %v315
    %v918 = vpop.f32.mrf.mxu0
    %v919 = vadd.f32 %v467, %v918
    %v920 = vpop.f32.mrf.mxu0
    %v921 = vpop.f32.mrf.mxu0
    %v922 = vadd.f32 %v467, %v921
    %v923 = vpop.f32.mrf.mxu0
    %924 = vmatprep.mubr.bf16.mxu0 %v323
    %925 = vmatmul.mubr.bf16.gmra.mxu0 %v322
    %v926 = vpop.f32.mrf.mxu0
    %v927 = vadd.f32 %v467, %v926
    %v928 = vpop.f32.mrf.mxu0
    %v929 = vpop.f32.mrf.mxu0
    %v930 = vadd.f32 %v467, %v929
    %v931 = vpop.f32.mrf.mxu0
    %932 = vmatprep.mubr.bf16.mxu0 %v330
    %933 = vmatmul.mubr.bf16.gmra.mxu0 %v329
    %v934 = vpop.f32.mrf.mxu0
    %v935 = vadd.f32 %v467, %v934
    %v936 = vpop.f32.mrf.mxu0
    %v937 = vpop.f32.mrf.mxu0
    %v938 = vadd.f32 %v467, %v937
    %v939 = vpop.f32.mrf.mxu0
    %940 = vmatprep.mubr.bf16.mxu0 %v337
    %941 = vmatmul.mubr.bf16.gmra.mxu0 %v336
    %v942 = vpop.f32.mrf.mxu0
    %v943 = vadd.f32 %v467, %v942
    %v944 = vpop.f32.mrf.mxu0
    %v945 = vpop.f32.mrf.mxu0
    %v946 = vadd.f32 %v467, %v945
    %v947 = vpop.f32.mrf.mxu0
    %948 = vmatprep.mubr.bf16.mxu0 %v344
    %949 = vmatmul.mubr.bf16.gmra.mxu0 %v343
    %v950 = vpop.f32.mrf.mxu0
    %v951 = vadd.f32 %v467, %v950
    %v952 = vpop.f32.mrf.mxu0
    %v953 = vpop.f32.mrf.mxu0
    %v954 = vadd.f32 %v467, %v953
    %v955 = vpop.f32.mrf.mxu0
    %956 = vmatprep.mubr.bf16.mxu0 %v351
    %957 = vmatmul.mubr.bf16.gmra.mxu0 %v350
    %v958 = vpop.f32.mrf.mxu0
    %v959 = vadd.f32 %v467, %v958
    %v960 = vpop.f32.mrf.mxu0
    %v961 = vpop.f32.mrf.mxu0
    %v962 = vadd.f32 %v467, %v961
    %v963 = vpop.f32.mrf.mxu0
    %964 = vmatprep.mubr.bf16.mxu0 %v358
    %965 = vmatmul.mubr.bf16.gmra.mxu0 %v357
    %v966 = vpop.f32.mrf.mxu0
    %v967 = vadd.f32 %v467, %v966
    %v968 = vpop.f32.mrf.mxu0
    %v969 = vpop.f32.mrf.mxu0
    %v970 = vadd.f32 %v467, %v969
    %v971 = vpop.f32.mrf.mxu0
    %972 = vdwg.mxu0
    %973 = vmatprep.subr.bf16.mxu0 0
    %974 = vmatpush1.bf16.msra.mxu0 %v688
    %975 = vmatprep.subr.bf16.mxu0 0
    %976 = vmatpush1.bf16.msra.mxu0 %v687
    %977 = vmatprep.subr.bf16.mxu0 0
    %978 = vmatpush1.bf16.msra.mxu0 %v686
    %979 = vmatprep.subr.bf16.mxu0 0
    %980 = vmatpush1.bf16.msra.mxu0 %v685
    %981 = vmatprep.subr.bf16.mxu0 0
    %982 = vmatpush1.bf16.msra.mxu0 %v684
    %983 = vmatprep.subr.bf16.mxu0 0
    %984 = vmatpush1.bf16.msra.mxu0 %v683
    %985 = vmatprep.subr.bf16.mxu0 0
    %986 = vmatpush1.bf16.msra.mxu0 %v682
    %987 = vmatprep.subr.bf16.mxu0 0
    %988 = vmatpush1.bf16.msra.mxu0 %v681
    %989 = vmatprep.subr.bf16.mxu0 0
    %990 = vmatpush2.bf16.msra.mxu0 %v696
    %991 = vmatprep.subr.bf16.mxu0 0
    %992 = vmatpush2.bf16.msra.mxu0 %v695
    %993 = vmatprep.subr.bf16.mxu0 0
    %994 = vmatpush2.bf16.msra.mxu0 %v694
    %995 = vmatprep.subr.bf16.mxu0 0
    %996 = vmatpush2.bf16.msra.mxu0 %v693
    %997 = vmatprep.subr.bf16.mxu0 0
    %998 = vmatpush2.bf16.msra.mxu0 %v692
    %999 = vmatprep.subr.bf16.mxu0 0
    %1000 = vmatpush2.bf16.msra.mxu0 %v691
    %1001 = vmatprep.subr.bf16.mxu0 0
    %1002 = vmatpush2.bf16.msra.mxu0 %v690
    %1003 = vmatprep.subr.bf16.mxu0 0
    %1004 = vmatpush2.bf16.msra.mxu0 %v689
    %1005 = vmatprep.mubr.bf16.mxu0 %v255
    %1006 = vmatmul.mubr.bf16.gmra.mxu0 %v254
    %v1007 = vpop.f32.mrf.mxu0
    %v1008 = vadd.f32 %v847, %v1007
    %v1009 = vpop.f32.mrf.mxu0
    %v1010 = vpop.f32.mrf.mxu0
    %v1011 = vadd.f32 %v850, %v1010
    %v1012 = vpop.f32.mrf.mxu0
    %1013 = vmatprep.mubr.bf16.mxu0 %v262
    %1014 = vmatmul.mubr.bf16.gmra.mxu0 %v261
    %v1015 = vpop.f32.mrf.mxu0
    %v1016 = vadd.f32 %v855, %v1015
    %v1017 = vpop.f32.mrf.mxu0
    %v1018 = vpop.f32.mrf.mxu0
    %v1019 = vadd.f32 %v858, %v1018
    %v1020 = vpop.f32.mrf.mxu0
    %1021 = vmatprep.mubr.bf16.mxu0 %v269
    %1022 = vmatmul.mubr.bf16.gmra.mxu0 %v268
    %v1023 = vpop.f32.mrf.mxu0
    %v1024 = vadd.f32 %v863, %v1023
    %v1025 = vpop.f32.mrf.mxu0
    %v1026 = vpop.f32.mrf.mxu0
    %v1027 = vadd.f32 %v866, %v1026
    %v1028 = vpop.f32.mrf.mxu0
    %1029 = vmatprep.mubr.bf16.mxu0 %v276
    %1030 = vmatmul.mubr.bf16.gmra.mxu0 %v275
    %v1031 = vpop.f32.mrf.mxu0
    %v1032 = vadd.f32 %v871, %v1031
    %v1033 = vpop.f32.mrf.mxu0
    %v1034 = vpop.f32.mrf.mxu0
    %v1035 = vadd.f32 %v874, %v1034
    %v1036 = vpop.f32.mrf.mxu0
    %1037 = vmatprep.mubr.bf16.mxu0 %v283
    %1038 = vmatmul.mubr.bf16.gmra.mxu0 %v282
    %v1039 = vpop.f32.mrf.mxu0
    %v1040 = vadd.f32 %v879, %v1039
    %v1041 = vpop.f32.mrf.mxu0
    %v1042 = vpop.f32.mrf.mxu0
    %v1043 = vadd.f32 %v882, %v1042
    %v1044 = vpop.f32.mrf.mxu0
    %1045 = vmatprep.mubr.bf16.mxu0 %v290
    %1046 = vmatmul.mubr.bf16.gmra.mxu0 %v289
    %v1047 = vpop.f32.mrf.mxu0
    %v1048 = vadd.f32 %v887, %v1047
    %v1049 = vpop.f32.mrf.mxu0
    %v1050 = vpop.f32.mrf.mxu0
    %v1051 = vadd.f32 %v890, %v1050
    %v1052 = vpop.f32.mrf.mxu0
    %1053 = vmatprep.mubr.bf16.mxu0 %v297
    %1054 = vmatmul.mubr.bf16.gmra.mxu0 %v296
    %v1055 = vpop.f32.mrf.mxu0
    %v1056 = vadd.f32 %v895, %v1055
    %v1057 = vpop.f32.mrf.mxu0
    %v1058 = vpop.f32.mrf.mxu0
    %v1059 = vadd.f32 %v898, %v1058
    %v1060 = vpop.f32.mrf.mxu0
    %1061 = vmatprep.mubr.bf16.mxu0 %v304
    %1062 = vmatmul.mubr.bf16.gmra.mxu0 %v303
    %v1063 = vpop.f32.mrf.mxu0
    %v1064 = vadd.f32 %v903, %v1063
    %v1065 = vpop.f32.mrf.mxu0
    %v1066 = vpop.f32.mrf.mxu0
    %v1067 = vadd.f32 %v906, %v1066
    %v1068 = vpop.f32.mrf.mxu0
    %1069 = vmatprep.mubr.bf16.mxu0 %v311
    %1070 = vmatmul.mubr.bf16.gmra.mxu0 %v310
    %v1071 = vpop.f32.mrf.mxu0
    %v1072 = vadd.f32 %v911, %v1071
    %v1073 = vpop.f32.mrf.mxu0
    %v1074 = vpop.f32.mrf.mxu0
    %v1075 = vadd.f32 %v914, %v1074
    %v1076 = vpop.f32.mrf.mxu0
    %1077 = vmatprep.mubr.bf16.mxu0 %v318
    %1078 = vmatmul.mubr.bf16.gmra.mxu0 %v317
    %v1079 = vpop.f32.mrf.mxu0
    %v1080 = vadd.f32 %v919, %v1079
    %v1081 = vpop.f32.mrf.mxu0
    %v1082 = vpop.f32.mrf.mxu0
    %v1083 = vadd.f32 %v922, %v1082
    %v1084 = vpop.f32.mrf.mxu0
    %1085 = vmatprep.mubr.bf16.mxu0 %v325
    %1086 = vmatmul.mubr.bf16.gmra.mxu0 %v324
    %v1087 = vpop.f32.mrf.mxu0
    %v1088 = vadd.f32 %v927, %v1087
    %v1089 = vpop.f32.mrf.mxu0
    %v1090 = vpop.f32.mrf.mxu0
    %v1091 = vadd.f32 %v930, %v1090
    %v1092 = vpop.f32.mrf.mxu0
    %1093 = vmatprep.mubr.bf16.mxu0 %v332
    %1094 = vmatmul.mubr.bf16.gmra.mxu0 %v331
    %v1095 = vpop.f32.mrf.mxu0
    %v1096 = vadd.f32 %v935, %v1095
    %v1097 = vpop.f32.mrf.mxu0
    %v1098 = vpop.f32.mrf.mxu0
    %v1099 = vadd.f32 %v938, %v1098
    %v1100 = vpop.f32.mrf.mxu0
    %1101 = vmatprep.mubr.bf16.mxu0 %v339
    %1102 = vmatmul.mubr.bf16.gmra.mxu0 %v338
    %v1103 = vpop.f32.mrf.mxu0
    %v1104 = vadd.f32 %v943, %v1103
    %v1105 = vpop.f32.mrf.mxu0
    %v1106 = vpop.f32.mrf.mxu0
    %v1107 = vadd.f32 %v946, %v1106
    %v1108 = vpop.f32.mrf.mxu0
    %1109 = vmatprep.mubr.bf16.mxu0 %v346
    %1110 = vmatmul.mubr.bf16.gmra.mxu0 %v345
    %v1111 = vpop.f32.mrf.mxu0
    %v1112 = vadd.f32 %v951, %v1111
    %v1113 = vpop.f32.mrf.mxu0
    %v1114 = vpop.f32.mrf.mxu0
    %v1115 = vadd.f32 %v954, %v1114
    %v1116 = vpop.f32.mrf.mxu0
    %1117 = vmatprep.mubr.bf16.mxu0 %v353
    %1118 = vmatmul.mubr.bf16.gmra.mxu0 %v352
    %v1119 = vpop.f32.mrf.mxu0
    %v1120 = vadd.f32 %v959, %v1119
    %v1121 = vpop.f32.mrf.mxu0
    %v1122 = vpop.f32.mrf.mxu0
    %v1123 = vadd.f32 %v962, %v1122
    %v1124 = vpop.f32.mrf.mxu0
    %1125 = vmatprep.mubr.bf16.mxu0 %v360
    %1126 = vmatmul.mubr.bf16.gmra.mxu0 %v359
    %v1127 = vpop.f32.mrf.mxu0
    %v1128 = vadd.f32 %v967, %v1127
    %v1129 = vpop.f32.mrf.mxu0
    %v1130 = vpop.f32.mrf.mxu0
    %v1131 = vadd.f32 %v970, %v1130
    %v1132 = vpop.f32.mrf.mxu0
    %1133 = vdwg.mxu0
    %1134 = vmatprep.subr.bf16.mxu0 0
    %1135 = vmatpush1.bf16.msra.mxu0 %v704
    %1136 = vmatprep.subr.bf16.mxu0 0
    %1137 = vmatpush1.bf16.msra.mxu0 %v703
    %1138 = vmatprep.subr.bf16.mxu0 0
    %1139 = vmatpush1.bf16.msra.mxu0 %v702
    %1140 = vmatprep.subr.bf16.mxu0 0
    %1141 = vmatpush1.bf16.msra.mxu0 %v701
    %1142 = vmatprep.subr.bf16.mxu0 0
    %1143 = vmatpush1.bf16.msra.mxu0 %v700
    %1144 = vmatprep.subr.bf16.mxu0 0
    %1145 = vmatpush1.bf16.msra.mxu0 %v699
    %1146 = vmatprep.subr.bf16.mxu0 0
    %1147 = vmatpush1.bf16.msra.mxu0 %v698
    %1148 = vmatprep.subr.bf16.mxu0 0
    %1149 = vmatpush1.bf16.msra.mxu0 %v697
    %1150 = vmatprep.subr.bf16.mxu0 0
    %1151 = vmatpush2.bf16.msra.mxu0 %v712
    %1152 = vmatprep.subr.bf16.mxu0 0
    %1153 = vmatpush2.bf16.msra.mxu0 %v711
    %1154 = vmatprep.subr.bf16.mxu0 0
    %1155 = vmatpush2.bf16.msra.mxu0 %v710
    %1156 = vmatprep.subr.bf16.mxu0 0
    %1157 = vmatpush2.bf16.msra.mxu0 %v709
    %1158 = vmatprep.subr.bf16.mxu0 0
    %1159 = vmatpush2.bf16.msra.mxu0 %v708
    %1160 = vmatprep.subr.bf16.mxu0 0
    %1161 = vmatpush2.bf16.msra.mxu0 %v707
    %1162 = vmatprep.subr.bf16.mxu0 0
    %1163 = vmatpush2.bf16.msra.mxu0 %v706
    %1164 = vmatprep.subr.bf16.mxu0 0
    %1165 = vmatpush2.bf16.msra.mxu0 %v705
    %1166 = vmatprep.mubr.bf16.mxu0 %v257
    %1167 = vmatmul.mubr.bf16.gmra.mxu0 %v256
    %v1168 = vpop.f32.mrf.mxu0
    %v1169 = vadd.f32 %v1008, %v1168
    %v1170 = vpop.f32.mrf.mxu0
    %v1171 = vpop.f32.mrf.mxu0
    %v1172 = vadd.f32 %v1011, %v1171
    %v1173 = vpop.f32.mrf.mxu0
    %1174 = vmatprep.mubr.bf16.mxu0 %v264
    %1175 = vmatmul.mubr.bf16.gmra.mxu0 %v263
    %v1176 = vpop.f32.mrf.mxu0
    %v1177 = vadd.f32 %v1016, %v1176
    %v1178 = vpop.f32.mrf.mxu0
    %v1179 = vpop.f32.mrf.mxu0
    %v1180 = vadd.f32 %v1019, %v1179
    %v1181 = vpop.f32.mrf.mxu0
    %1182 = vmatprep.mubr.bf16.mxu0 %v271
    %1183 = vmatmul.mubr.bf16.gmra.mxu0 %v270
    %v1184 = vpop.f32.mrf.mxu0
    %v1185 = vadd.f32 %v1024, %v1184
    %v1186 = vpop.f32.mrf.mxu0
    %v1187 = vpop.f32.mrf.mxu0
    %v1188 = vadd.f32 %v1027, %v1187
    %v1189 = vpop.f32.mrf.mxu0
    %1190 = vmatprep.mubr.bf16.mxu0 %v278
    %1191 = vmatmul.mubr.bf16.gmra.mxu0 %v277
    %v1192 = vpop.f32.mrf.mxu0
    %v1193 = vadd.f32 %v1032, %v1192
    %v1194 = vpop.f32.mrf.mxu0
    %v1195 = vpop.f32.mrf.mxu0
    %v1196 = vadd.f32 %v1035, %v1195
    %v1197 = vpop.f32.mrf.mxu0
    %1198 = vmatprep.mubr.bf16.mxu0 %v285
    %1199 = vmatmul.mubr.bf16.gmra.mxu0 %v284
    %v1200 = vpop.f32.mrf.mxu0
    %v1201 = vadd.f32 %v1040, %v1200
    %v1202 = vpop.f32.mrf.mxu0
    %v1203 = vpop.f32.mrf.mxu0
    %v1204 = vadd.f32 %v1043, %v1203
    %v1205 = vpop.f32.mrf.mxu0
    %1206 = vmatprep.mubr.bf16.mxu0 %v292
    %1207 = vmatmul.mubr.bf16.gmra.mxu0 %v291
    %v1208 = vpop.f32.mrf.mxu0
    %v1209 = vadd.f32 %v1048, %v1208
    %v1210 = vpop.f32.mrf.mxu0
    %v1211 = vpop.f32.mrf.mxu0
    %v1212 = vadd.f32 %v1051, %v1211
    %v1213 = vpop.f32.mrf.mxu0
    %1214 = vmatprep.mubr.bf16.mxu0 %v299
    %1215 = vmatmul.mubr.bf16.gmra.mxu0 %v298
    %v1216 = vpop.f32.mrf.mxu0
    %v1217 = vadd.f32 %v1056, %v1216
    %v1218 = vpop.f32.mrf.mxu0
    %v1219 = vpop.f32.mrf.mxu0
    %v1220 = vadd.f32 %v1059, %v1219
    %v1221 = vpop.f32.mrf.mxu0
    %1222 = vmatprep.mubr.bf16.mxu0 %v306
    %1223 = vmatmul.mubr.bf16.gmra.mxu0 %v305
    %v1224 = vpop.f32.mrf.mxu0
    %v1225 = vadd.f32 %v1064, %v1224
    %v1226 = vpop.f32.mrf.mxu0
    %v1227 = vpop.f32.mrf.mxu0
    %v1228 = vadd.f32 %v1067, %v1227
    %v1229 = vpop.f32.mrf.mxu0
    %1230 = vmatprep.mubr.bf16.mxu0 %v313
    %1231 = vmatmul.mubr.bf16.gmra.mxu0 %v312
    %v1232 = vpop.f32.mrf.mxu0
    %v1233 = vadd.f32 %v1072, %v1232
    %v1234 = vpop.f32.mrf.mxu0
    %v1235 = vpop.f32.mrf.mxu0
    %v1236 = vadd.f32 %v1075, %v1235
    %v1237 = vpop.f32.mrf.mxu0
    %1238 = vmatprep.mubr.bf16.mxu0 %v320
    %1239 = vmatmul.mubr.bf16.gmra.mxu0 %v319
    %v1240 = vpop.f32.mrf.mxu0
    %v1241 = vadd.f32 %v1080, %v1240
    %v1242 = vpop.f32.mrf.mxu0
    %v1243 = vpop.f32.mrf.mxu0
    %v1244 = vadd.f32 %v1083, %v1243
    %v1245 = vpop.f32.mrf.mxu0
    %1246 = vmatprep.mubr.bf16.mxu0 %v327
    %1247 = vmatmul.mubr.bf16.gmra.mxu0 %v326
    %v1248 = vpop.f32.mrf.mxu0
    %v1249 = vadd.f32 %v1088, %v1248
    %v1250 = vpop.f32.mrf.mxu0
    %v1251 = vpop.f32.mrf.mxu0
    %v1252 = vadd.f32 %v1091, %v1251
    %v1253 = vpop.f32.mrf.mxu0
    %1254 = vmatprep.mubr.bf16.mxu0 %v334
    %1255 = vmatmul.mubr.bf16.gmra.mxu0 %v333
    %v1256 = vpop.f32.mrf.mxu0
    %v1257 = vadd.f32 %v1096, %v1256
    %v1258 = vpop.f32.mrf.mxu0
    %v1259 = vpop.f32.mrf.mxu0
    %v1260 = vadd.f32 %v1099, %v1259
    %v1261 = vpop.f32.mrf.mxu0
    %1262 = vmatprep.mubr.bf16.mxu0 %v341
    %1263 = vmatmul.mubr.bf16.gmra.mxu0 %v340
    %v1264 = vpop.f32.mrf.mxu0
    %v1265 = vadd.f32 %v1104, %v1264
    %v1266 = vpop.f32.mrf.mxu0
    %v1267 = vpop.f32.mrf.mxu0
    %v1268 = vadd.f32 %v1107, %v1267
    %v1269 = vpop.f32.mrf.mxu0
    %1270 = vmatprep.mubr.bf16.mxu0 %v348
    %1271 = vmatmul.mubr.bf16.gmra.mxu0 %v347
    %v1272 = vpop.f32.mrf.mxu0
    %v1273 = vadd.f32 %v1112, %v1272
    %v1274 = vpop.f32.mrf.mxu0
    %v1275 = vpop.f32.mrf.mxu0
    %v1276 = vadd.f32 %v1115, %v1275
    %v1277 = vpop.f32.mrf.mxu0
    %1278 = vmatprep.mubr.bf16.mxu0 %v355
    %1279 = vmatmul.mubr.bf16.gmra.mxu0 %v354
    %v1280 = vpop.f32.mrf.mxu0
    %v1281 = vadd.f32 %v1120, %v1280
    %v1282 = vpop.f32.mrf.mxu0
    %v1283 = vpop.f32.mrf.mxu0
    %v1284 = vadd.f32 %v1123, %v1283
    %v1285 = vpop.f32.mrf.mxu0
    %1286 = vmatprep.mubr.bf16.mxu0 %v362
    %1287 = vmatmul.mubr.bf16.gmra.mxu0 %v361
    %v1288 = vpop.f32.mrf.mxu0
    %v1289 = vadd.f32 %v1128, %v1288
    %v1290 = vpop.f32.mrf.mxu0
    %v1291 = vpop.f32.mrf.mxu0
    %v1292 = vadd.f32 %v1131, %v1291
    %v1293 = vpop.f32.mrf.mxu0
    %1294 = vdwg.mxu0
    %1295 = vmatprep.subr.bf16.mxu0 0
    %1296 = vmatpush1.bf16.msra.mxu0 0
    %1297 = vmatprep.subr.bf16.mxu0 0
    %1298 = vmatpush1.bf16.msra.mxu0 0
    %1299 = vmatprep.subr.bf16.mxu0 0
    %1300 = vmatpush1.bf16.msra.mxu0 0
    %1301 = vmatprep.subr.bf16.mxu0 0
    %1302 = vmatpush1.bf16.msra.mxu0 0
    %1303 = vmatprep.subr.bf16.mxu0 0
    %1304 = vmatpush1.bf16.msra.mxu0 0
    %1305 = vmatprep.subr.bf16.mxu0 0
    %1306 = vmatpush1.bf16.msra.mxu0 0
    %1307 = vmatprep.subr.bf16.mxu0 0
    %1308 = vmatpush1.bf16.msra.mxu0 0
    %1309 = vmatprep.subr.bf16.mxu0 0
    %1310 = vmatpush1.bf16.msra.mxu0 %v713
    %1311 = vmatprep.subr.bf16.mxu0 0
    %1312 = vmatpush2.bf16.msra.mxu0 0
    %1313 = vmatprep.subr.bf16.mxu0 0
    %1314 = vmatpush2.bf16.msra.mxu0 0
    %1315 = vmatprep.subr.bf16.mxu0 0
    %1316 = vmatpush2.bf16.msra.mxu0 0
    %1317 = vmatprep.subr.bf16.mxu0 0
    %1318 = vmatpush2.bf16.msra.mxu0 0
    %1319 = vmatprep.subr.bf16.mxu0 0
    %1320 = vmatpush2.bf16.msra.mxu0 0
    %1321 = vmatprep.subr.bf16.mxu0 0
    %1322 = vmatpush2.bf16.msra.mxu0 0
    %1323 = vmatprep.subr.bf16.mxu0 0
    %1324 = vmatpush2.bf16.msra.mxu0 0
    %1325 = vmatprep.subr.bf16.mxu0 0
    %1326 = vmatpush2.bf16.msra.mxu0 0
    %1327 = vmatprep.mubr.bf16.mxu0 0
    %1328 = vmatmul.mubr.bf16.gmra.mxu0 %v765
    %v1329 = vpop.f32.mrf.mxu0
    %v1330 = vadd.f32 %v1169, %v1329
    %v1331 = vpop.f32.mrf.mxu0
    %v1332 = vpop.f32.mrf.mxu0
    %v1333 = vadd.f32 %v1172, %v1332
    %v1334 = vpop.f32.mrf.mxu0
    %1335 = vmatprep.mubr.bf16.mxu0 0
    %1336 = vmatmul.mubr.bf16.gmra.mxu0 %v768
    %v1337 = vpop.f32.mrf.mxu0
    %v1338 = vadd.f32 %v1177, %v1337
    %v1339 = vpop.f32.mrf.mxu0
    %v1340 = vpop.f32.mrf.mxu0
    %v1341 = vadd.f32 %v1180, %v1340
    %v1342 = vpop.f32.mrf.mxu0
    %1343 = vmatprep.mubr.bf16.mxu0 0
    %1344 = vmatmul.mubr.bf16.gmra.mxu0 %v771
    %v1345 = vpop.f32.mrf.mxu0
    %v1346 = vadd.f32 %v1185, %v1345
    %v1347 = vpop.f32.mrf.mxu0
    %v1348 = vpop.f32.mrf.mxu0
    %v1349 = vadd.f32 %v1188, %v1348
    %v1350 = vpop.f32.mrf.mxu0
    %1351 = vmatprep.mubr.bf16.mxu0 0
    %1352 = vmatmul.mubr.bf16.gmra.mxu0 %v774
    %v1353 = vpop.f32.mrf.mxu0
    %v1354 = vadd.f32 %v1193, %v1353
    %v1355 = vpop.f32.mrf.mxu0
    %v1356 = vpop.f32.mrf.mxu0
    %v1357 = vadd.f32 %v1196, %v1356
    %v1358 = vpop.f32.mrf.mxu0
    %1359 = vmatprep.mubr.bf16.mxu0 0
    %1360 = vmatmul.mubr.bf16.gmra.mxu0 %v777
    %v1361 = vpop.f32.mrf.mxu0
    %v1362 = vadd.f32 %v1201, %v1361
    %v1363 = vpop.f32.mrf.mxu0
    %v1364 = vpop.f32.mrf.mxu0
    %v1365 = vadd.f32 %v1204, %v1364
    %v1366 = vpop.f32.mrf.mxu0
    %1367 = vmatprep.mubr.bf16.mxu0 0
    %1368 = vmatmul.mubr.bf16.gmra.mxu0 %v780
    %v1369 = vpop.f32.mrf.mxu0
    %v1370 = vadd.f32 %v1209, %v1369
    %v1371 = vpop.f32.mrf.mxu0
    %v1372 = vpop.f32.mrf.mxu0
    %v1373 = vadd.f32 %v1212, %v1372
    %v1374 = vpop.f32.mrf.mxu0
    %1375 = vmatprep.mubr.bf16.mxu0 0
    %1376 = vmatmul.mubr.bf16.gmra.mxu0 %v783
    %v1377 = vpop.f32.mrf.mxu0
    %v1378 = vadd.f32 %v1217, %v1377
    %v1379 = vpop.f32.mrf.mxu0
    %v1380 = vpop.f32.mrf.mxu0
    %v1381 = vadd.f32 %v1220, %v1380
    %v1382 = vpop.f32.mrf.mxu0
    %1383 = vmatprep.mubr.bf16.mxu0 0
    %1384 = vmatmul.mubr.bf16.gmra.mxu0 %v786
    %v1385 = vpop.f32.mrf.mxu0
    %v1386 = vadd.f32 %v1225, %v1385
    %v1387 = vpop.f32.mrf.mxu0
    %v1388 = vpop.f32.mrf.mxu0
    %v1389 = vadd.f32 %v1228, %v1388
    %v1390 = vpop.f32.mrf.mxu0
    %1391 = vmatprep.mubr.bf16.mxu0 0
    %1392 = vmatmul.mubr.bf16.gmra.mxu0 %v789
    %v1393 = vpop.f32.mrf.mxu0
    %v1394 = vadd.f32 %v1233, %v1393
    %v1395 = vpop.f32.mrf.mxu0
    %v1396 = vpop.f32.mrf.mxu0
    %v1397 = vadd.f32 %v1236, %v1396
    %v1398 = vpop.f32.mrf.mxu0
    %1399 = vmatprep.mubr.bf16.mxu0 0
    %1400 = vmatmul.mubr.bf16.gmra.mxu0 %v792
    %v1401 = vpop.f32.mrf.mxu0
    %v1402 = vadd.f32 %v1241, %v1401
    %v1403 = vpop.f32.mrf.mxu0
    %v1404 = vpop.f32.mrf.mxu0
    %v1405 = vadd.f32 %v1244, %v1404
    %v1406 = vpop.f32.mrf.mxu0
    %1407 = vmatprep.mubr.bf16.mxu0 0
    %1408 = vmatmul.mubr.bf16.gmra.mxu0 %v795
    %v1409 = vpop.f32.mrf.mxu0
    %v1410 = vadd.f32 %v1249, %v1409
    %v1411 = vpop.f32.mrf.mxu0
    %v1412 = vpop.f32.mrf.mxu0
    %v1413 = vadd.f32 %v1252, %v1412
    %v1414 = vpop.f32.mrf.mxu0
    %1415 = vmatprep.mubr.bf16.mxu0 0
    %1416 = vmatmul.mubr.bf16.gmra.mxu0 %v798
    %v1417 = vpop.f32.mrf.mxu0
    %v1418 = vadd.f32 %v1257, %v1417
    %v1419 = vpop.f32.mrf.mxu0
    %v1420 = vpop.f32.mrf.mxu0
    %v1421 = vadd.f32 %v1260, %v1420
    %v1422 = vpop.f32.mrf.mxu0
    %1423 = vmatprep.mubr.bf16.mxu0 0
    %1424 = vmatmul.mubr.bf16.gmra.mxu0 %v801
    %v1425 = vpop.f32.mrf.mxu0
    %v1426 = vadd.f32 %v1265, %v1425
    %v1427 = vpop.f32.mrf.mxu0
    %v1428 = vpop.f32.mrf.mxu0
    %v1429 = vadd.f32 %v1268, %v1428
    %v1430 = vpop.f32.mrf.mxu0
    %1431 = vmatprep.mubr.bf16.mxu0 0
    %1432 = vmatmul.mubr.bf16.gmra.mxu0 %v804
    %v1433 = vpop.f32.mrf.mxu0
    %v1434 = vadd.f32 %v1273, %v1433
    %v1435 = vpop.f32.mrf.mxu0
    %v1436 = vpop.f32.mrf.mxu0
    %v1437 = vadd.f32 %v1276, %v1436
    %v1438 = vpop.f32.mrf.mxu0
    %1439 = vmatprep.mubr.bf16.mxu0 0
    %1440 = vmatmul.mubr.bf16.gmra.mxu0 %v807
    %v1441 = vpop.f32.mrf.mxu0
    %v1442 = vadd.f32 %v1281, %v1441
    %v1443 = vpop.f32.mrf.mxu0
    %v1444 = vpop.f32.mrf.mxu0
    %v1445 = vadd.f32 %v1284, %v1444
    %v1446 = vpop.f32.mrf.mxu0
    %1447 = vmatprep.mubr.bf16.mxu0 0
    %1448 = vmatmul.mubr.bf16.gmra.mxu0 %v810
    %v1449 = vpop.f32.mrf.mxu0
    %v1450 = vadd.f32 %v1289, %v1449
    %v1451 = vpop.f32.mrf.mxu0
    %v1452 = vpop.f32.mrf.mxu0
    %v1453 = vadd.f32 %v1292, %v1452
    %v1454 = vpop.f32.mrf.mxu0
    %1455 = vdwg.mxu0
    %v1456 = vmax.f32 %v1330, 0.0
    %v1457 = vmax.f32 %v1333, 0.0
    %v1458 = vmax.f32 %v1338, 0.0
    %v1459 = vmax.f32 %v1341, 0.0
    %v1460 = vmax.f32 %v1346, 0.0
    %v1461 = vmax.f32 %v1349, 0.0
    %v1462 = vmax.f32 %v1354, 0.0
    %v1463 = vmax.f32 %v1357, 0.0
    %v1464 = vmax.f32 %v1362, 0.0
    %v1465 = vmax.f32 %v1365, 0.0
    %v1466 = vmax.f32 %v1370, 0.0
    %v1467 = vmax.f32 %v1373, 0.0
    %v1468 = vmax.f32 %v1378, 0.0
    %v1469 = vmax.f32 %v1381, 0.0
    %v1470 = vmax.f32 %v1386, 0.0
    %v1471 = vmax.f32 %v1389, 0.0
    %v1472 = vmax.f32 %v1394, 0.0
    %v1473 = vmax.f32 %v1397, 0.0
    %v1474 = vmax.f32 %v1402, 0.0
    %v1475 = vmax.f32 %v1405, 0.0
    %v1476 = vmax.f32 %v1410, 0.0
    %v1477 = vmax.f32 %v1413, 0.0
    %v1478 = vmax.f32 %v1418, 0.0
    %v1479 = vmax.f32 %v1421, 0.0
    %v1480 = vmax.f32 %v1426, 0.0
    %v1481 = vmax.f32 %v1429, 0.0
    %v1482 = vmax.f32 %v1434, 0.0
    %v1483 = vmax.f32 %v1437, 0.0
    %v1484 = vmax.f32 %v1442, 0.0
    %v1485 = vmax.f32 %v1445, 0.0
    %v1486 = vmax.f32 %v1450, 0.0
    %v1487 = vmax.f32 %v1453, 0.0
    %v1488 = vpack.c.bf16 %v1457, %v1456
    %v1489 = vpack.c.bf16 %v1459, %v1458
    %v1490 = vpack.c.bf16 %v1461, %v1460
    %v1491 = vpack.c.bf16 %v1463, %v1462
    %v1492 = vpack.c.bf16 %v1465, %v1464
    %v1493 = vpack.c.bf16 %v1467, %v1466
    %v1494 = vpack.c.bf16 %v1469, %v1468
    %v1495 = vpack.c.bf16 %v1471, %v1470
    %v1496 = vpack.c.bf16 %v1473, %v1472
    %v1497 = vpack.c.bf16 %v1475, %v1474
    %v1498 = vpack.c.bf16 %v1477, %v1476
    %v1499 = vpack.c.bf16 %v1479, %v1478
    %v1500 = vpack.c.bf16 %v1481, %v1480
    %v1501 = vpack.c.bf16 %v1483, %v1482
    %v1502 = vpack.c.bf16 %v1485, %v1484
    %v1503 = vpack.c.bf16 %v1487, %v1486
    %v1504 = vld [vmem:[%s3] sm:$0xf]
    %v1505 = vld [vmem:[%s3 + $0x4] sm:$0xf]
    %v1506 = vld [vmem:[%s3 + $0x8] sm:$0xf]
    %v1507 = vld [vmem:[%s3 + $0xc] sm:$0xf]
    %v1508 = vld [vmem:[%s3 + $0x10] sm:$0xf]
    %v1509 = vld [vmem:[%s3 + $0x14] sm:$0xf]
    %v1510 = vld [vmem:[%s3 + $0x18] sm:$0xf]
    %v1511 = vld [vmem:[%s3 + $0x1c] sm:$0xf]
    %v1512 = vld [vmem:[%s3 + $0x20] sm:$0xf]
    %v1513 = vld [vmem:[%s3 + $0x24] sm:$0xf]
    %v1514 = vld [vmem:[%s3 + $0x28] sm:$0xf]
    %v1515 = vld [vmem:[%s3 + $0x2c] sm:$0xf]
    %v1516 = vld [vmem:[%s3 + $0x30] sm:$0xf]
    %v1517 = vld [vmem:[%s3 + $0x34] sm:$0xf]
    %v1518 = vld [vmem:[%s3 + $0x38] sm:$0xf]
    %v1519 = vld [vmem:[%s3 + $0x3c] sm:$0xf]
    %v1520 = vld [vmem:[%s4] sm:$0x1]
    %v1522 = vlaneseq
    %v1523 = vshrl.u32 %v1522, 7
    %v1524 = vsub.s32 0, %v1523
    %v1525 = vrot.slane %v1520, %v1524
    %v1543 = vunpack.c.l.b16 %v1504
    %v1544 = vunpack.c.l.b16 %v1505
    %v1545 = vunpack.c.l.b16 %v1506
    %v1546 = vunpack.c.l.b16 %v1507
    %v1547 = vunpack.c.l.b16 %v1508
    %v1548 = vunpack.c.l.b16 %v1509
    %v1549 = vunpack.c.l.b16 %v1510
    %v1550 = vunpack.c.l.b16 %v1511
    %v1551 = vunpack.c.l.b16 %v1512
    %v1552 = vunpack.c.l.b16 %v1513
    %v1553 = vunpack.c.l.b16 %v1514
    %v1554 = vunpack.c.l.b16 %v1515
    %v1555 = vunpack.c.l.b16 %v1516
    %v1556 = vunpack.c.l.b16 %v1517
    %v1557 = vunpack.c.l.b16 %v1518
    %v1558 = vunpack.c.l.b16 %v1519
    %v1559 = vpack.c.b16 %v1544, %v1543
    %v1560 = vpack.c.b16 %v1546, %v1545
    %v1561 = vpack.c.b16 %v1548, %v1547
    %v1562 = vpack.c.b16 %v1550, %v1549
    %v1563 = vpack.c.b16 %v1552, %v1551
    %v1564 = vpack.c.b16 %v1554, %v1553
    %v1565 = vpack.c.b16 %v1556, %v1555
    %v1566 = vpack.c.b16 %v1558, %v1557
    %1575 = vmatprep.subr.bf16.mxu0 0
    %1576 = vmatpush1.bf16.msra.mxu0 %v1566
    %1577 = vmatprep.subr.bf16.mxu0 0
    %1578 = vmatpush1.bf16.msra.mxu0 %v1565
    %1579 = vmatprep.subr.bf16.mxu0 0
    %1580 = vmatpush1.bf16.msra.mxu0 %v1564
    %1581 = vmatprep.subr.bf16.mxu0 0
    %1582 = vmatpush1.bf16.msra.mxu0 %v1563
    %1583 = vmatprep.subr.bf16.mxu0 0
    %1584 = vmatpush1.bf16.msra.mxu0 %v1562
    %1585 = vmatprep.subr.bf16.mxu0 0
    %1586 = vmatpush1.bf16.msra.mxu0 %v1561
    %1587 = vmatprep.subr.bf16.mxu0 0
    %1588 = vmatpush1.bf16.msra.mxu0 %v1560
    %1589 = vmatprep.subr.bf16.mxu0 0
    %1590 = vmatpush1.bf16.msra.mxu0 %v1559
    %1591 = vmatprep.subr.bf16.mxu0 0
    %1592 = vmatpush2.bf16.msra.mxu0 0
    %1593 = vmatprep.subr.bf16.mxu0 0
    %1594 = vmatpush2.bf16.msra.mxu0 0
    %1595 = vmatprep.subr.bf16.mxu0 0
    %1596 = vmatpush2.bf16.msra.mxu0 0
    %1597 = vmatprep.subr.bf16.mxu0 0
    %1598 = vmatpush2.bf16.msra.mxu0 0
    %1599 = vmatprep.subr.bf16.mxu0 0
    %1600 = vmatpush2.bf16.msra.mxu0 0
    %1601 = vmatprep.subr.bf16.mxu0 0
    %1602 = vmatpush2.bf16.msra.mxu0 0
    %1603 = vmatprep.subr.bf16.mxu0 0
    %1604 = vmatpush2.bf16.msra.mxu0 0
    %1605 = vmatprep.subr.bf16.mxu0 0
    %1606 = vmatpush2.bf16.msra.mxu0 0
    %1607 = vmatprep.mubr.bf16.mxu0 0
    %1608 = vmatmul.mubr.bf16.gmra.mxu0 %v1488
    %v1609 = vpop.f32.mrf.mxu0
    %v1610 = vadd.f32 %v1525, %v1609
    %v1611 = vpop.f32.mrf.mxu0
    %v1612 = vpop.f32.mrf.mxu0
    %v1613 = vadd.f32 %v1525, %v1612
    %v1614 = vpop.f32.mrf.mxu0
    %1615 = vmatprep.mubr.bf16.mxu0 0
    %1616 = vmatmul.mubr.bf16.gmra.mxu0 %v1489
    %v1617 = vpop.f32.mrf.mxu0
    %v1618 = vadd.f32 %v1525, %v1617
    %v1619 = vpop.f32.mrf.mxu0
    %v1620 = vpop.f32.mrf.mxu0
    %v1621 = vadd.f32 %v1525, %v1620
    %v1622 = vpop.f32.mrf.mxu0
    %1623 = vmatprep.mubr.bf16.mxu0 0
    %1624 = vmatmul.mubr.bf16.gmra.mxu0 %v1490
    %v1625 = vpop.f32.mrf.mxu0
    %v1626 = vadd.f32 %v1525, %v1625
    %v1627 = vpop.f32.mrf.mxu0
    %v1628 = vpop.f32.mrf.mxu0
    %v1629 = vadd.f32 %v1525, %v1628
    %v1630 = vpop.f32.mrf.mxu0
    %1631 = vmatprep.mubr.bf16.mxu0 0
    %1632 = vmatmul.mubr.bf16.gmra.mxu0 %v1491
    %v1633 = vpop.f32.mrf.mxu0
    %v1634 = vadd.f32 %v1525, %v1633
    %v1635 = vpop.f32.mrf.mxu0
    %v1636 = vpop.f32.mrf.mxu0
    %v1637 = vadd.f32 %v1525, %v1636
    %v1638 = vpop.f32.mrf.mxu0
    %1639 = vmatprep.mubr.bf16.mxu0 0
    %1640 = vmatmul.mubr.bf16.gmra.mxu0 %v1492
    %v1641 = vpop.f32.mrf.mxu0
    %v1642 = vadd.f32 %v1525, %v1641
    %v1643 = vpop.f32.mrf.mxu0
    %v1644 = vpop.f32.mrf.mxu0
    %v1645 = vadd.f32 %v1525, %v1644
    %v1646 = vpop.f32.mrf.mxu0
    %1647 = vmatprep.mubr.bf16.mxu0 0
    %1648 = vmatmul.mubr.bf16.gmra.mxu0 %v1493
    %v1649 = vpop.f32.mrf.mxu0
    %v1650 = vadd.f32 %v1525, %v1649
    %v1651 = vpop.f32.mrf.mxu0
    %v1652 = vpop.f32.mrf.mxu0
    %v1653 = vadd.f32 %v1525, %v1652
    %v1654 = vpop.f32.mrf.mxu0
    %1655 = vmatprep.mubr.bf16.mxu0 0
    %1656 = vmatmul.mubr.bf16.gmra.mxu0 %v1494
    %v1657 = vpop.f32.mrf.mxu0
    %v1658 = vadd.f32 %v1525, %v1657
    %v1659 = vpop.f32.mrf.mxu0
    %v1660 = vpop.f32.mrf.mxu0
    %v1661 = vadd.f32 %v1525, %v1660
    %v1662 = vpop.f32.mrf.mxu0
    %1663 = vmatprep.mubr.bf16.mxu0 0
    %1664 = vmatmul.mubr.bf16.gmra.mxu0 %v1495
    %v1665 = vpop.f32.mrf.mxu0
    %v1666 = vadd.f32 %v1525, %v1665
    %v1667 = vpop.f32.mrf.mxu0
    %v1668 = vpop.f32.mrf.mxu0
    %v1669 = vadd.f32 %v1525, %v1668
    %v1670 = vpop.f32.mrf.mxu0
    %1671 = vmatprep.mubr.bf16.mxu0 0
    %1672 = vmatmul.mubr.bf16.gmra.mxu0 %v1496
    %v1673 = vpop.f32.mrf.mxu0
    %v1674 = vadd.f32 %v1525, %v1673
    %v1675 = vpop.f32.mrf.mxu0
    %v1676 = vpop.f32.mrf.mxu0
    %v1677 = vadd.f32 %v1525, %v1676
    %v1678 = vpop.f32.mrf.mxu0
    %1679 = vmatprep.mubr.bf16.mxu0 0
    %1680 = vmatmul.mubr.bf16.gmra.mxu0 %v1497
    %v1681 = vpop.f32.mrf.mxu0
    %v1682 = vadd.f32 %v1525, %v1681
    %v1683 = vpop.f32.mrf.mxu0
    %v1684 = vpop.f32.mrf.mxu0
    %v1685 = vadd.f32 %v1525, %v1684
    %v1686 = vpop.f32.mrf.mxu0
    %1687 = vmatprep.mubr.bf16.mxu0 0
    %1688 = vmatmul.mubr.bf16.gmra.mxu0 %v1498
    %v1689 = vpop.f32.mrf.mxu0
    %v1690 = vadd.f32 %v1525, %v1689
    %v1691 = vpop.f32.mrf.mxu0
    %v1692 = vpop.f32.mrf.mxu0
    %v1693 = vadd.f32 %v1525, %v1692
    %v1694 = vpop.f32.mrf.mxu0
    %1695 = vmatprep.mubr.bf16.mxu0 0
    %1696 = vmatmul.mubr.bf16.gmra.mxu0 %v1499
    %v1697 = vpop.f32.mrf.mxu0
    %v1698 = vadd.f32 %v1525, %v1697
    %v1699 = vpop.f32.mrf.mxu0
    %v1700 = vpop.f32.mrf.mxu0
    %v1701 = vadd.f32 %v1525, %v1700
    %v1702 = vpop.f32.mrf.mxu0
    %1703 = vmatprep.mubr.bf16.mxu0 0
    %1704 = vmatmul.mubr.bf16.gmra.mxu0 %v1500
    %v1705 = vpop.f32.mrf.mxu0
    %v1706 = vadd.f32 %v1525, %v1705
    %v1707 = vpop.f32.mrf.mxu0
    %v1708 = vpop.f32.mrf.mxu0
    %v1709 = vadd.f32 %v1525, %v1708
    %v1710 = vpop.f32.mrf.mxu0
    %1711 = vmatprep.mubr.bf16.mxu0 0
    %1712 = vmatmul.mubr.bf16.gmra.mxu0 %v1501
    %v1713 = vpop.f32.mrf.mxu0
    %v1714 = vadd.f32 %v1525, %v1713
    %v1715 = vpop.f32.mrf.mxu0
    %v1716 = vpop.f32.mrf.mxu0
    %v1717 = vadd.f32 %v1525, %v1716
    %v1718 = vpop.f32.mrf.mxu0
    %1719 = vmatprep.mubr.bf16.mxu0 0
    %1720 = vmatmul.mubr.bf16.gmra.mxu0 %v1502
    %v1721 = vpop.f32.mrf.mxu0
    %v1722 = vadd.f32 %v1525, %v1721
    %v1723 = vpop.f32.mrf.mxu0
    %v1724 = vpop.f32.mrf.mxu0
    %v1725 = vadd.f32 %v1525, %v1724
    %v1726 = vpop.f32.mrf.mxu0
    %1727 = vmatprep.mubr.bf16.mxu0 0
    %1728 = vmatmul.mubr.bf16.gmra.mxu0 %v1503
    %v1729 = vpop.f32.mrf.mxu0
    %v1730 = vadd.f32 %v1525, %v1729
    %v1731 = vpop.f32.mrf.mxu0
    %v1732 = vpop.f32.mrf.mxu0
    %v1733 = vadd.f32 %v1525, %v1732
    %v1734 = vpop.f32.mrf.mxu0
    %1735 = vdwg.mxu0
    %v1736 = vmax.f32 %v1610, 0.0
    %v1737 = vmax.f32 %v1613, 0.0
    %v1738 = vmax.f32 %v1618, 0.0
    %v1739 = vmax.f32 %v1621, 0.0
    %v1740 = vmax.f32 %v1626, 0.0
    %v1741 = vmax.f32 %v1629, 0.0
    %v1742 = vmax.f32 %v1634, 0.0
    %v1743 = vmax.f32 %v1637, 0.0
    %v1744 = vmax.f32 %v1642, 0.0
    %v1745 = vmax.f32 %v1645, 0.0
    %v1746 = vmax.f32 %v1650, 0.0
    %v1747 = vmax.f32 %v1653, 0.0
    %v1748 = vmax.f32 %v1658, 0.0
    %v1749 = vmax.f32 %v1661, 0.0
    %v1750 = vmax.f32 %v1666, 0.0
    %v1751 = vmax.f32 %v1669, 0.0
    %v1752 = vmax.f32 %v1674, 0.0
    %v1753 = vmax.f32 %v1677, 0.0
    %v1754 = vmax.f32 %v1682, 0.0
    %v1755 = vmax.f32 %v1685, 0.0
    %v1756 = vmax.f32 %v1690, 0.0
    %v1757 = vmax.f32 %v1693, 0.0
    %v1758 = vmax.f32 %v1698, 0.0
    %v1759 = vmax.f32 %v1701, 0.0
    %v1760 = vmax.f32 %v1706, 0.0
    %v1761 = vmax.f32 %v1709, 0.0
    %v1762 = vmax.f32 %v1714, 0.0
    %v1763 = vmax.f32 %v1717, 0.0
    %v1764 = vmax.f32 %v1722, 0.0
    %v1765 = vmax.f32 %v1725, 0.0
    %v1766 = vmax.f32 %v1730, 0.0
    %v1767 = vmax.f32 %v1733, 0.0
    %v1768 = vpack.c.bf16 %v1737, %v1736
    %v1769 = vpack.c.bf16 %v1739, %v1738
    %v1770 = vpack.c.bf16 %v1741, %v1740
    %v1771 = vpack.c.bf16 %v1743, %v1742
    %v1772 = vpack.c.bf16 %v1745, %v1744
    %v1773 = vpack.c.bf16 %v1747, %v1746
    %v1774 = vpack.c.bf16 %v1749, %v1748
    %v1775 = vpack.c.bf16 %v1751, %v1750
    %v1776 = vpack.c.bf16 %v1753, %v1752
    %v1777 = vpack.c.bf16 %v1755, %v1754
    %v1778 = vpack.c.bf16 %v1757, %v1756
    %v1779 = vpack.c.bf16 %v1759, %v1758
    %v1780 = vpack.c.bf16 %v1761, %v1760
    %v1781 = vpack.c.bf16 %v1763, %v1762
    %v1782 = vpack.c.bf16 %v1765, %v1764
    %v1783 = vpack.c.bf16 %v1767, %v1766
    %v1784 = vld [vmem:[%s5] sm:$0xf]
    %v1785 = vld [vmem:[%s5 + $0x4] sm:$0xf]
    %v1786 = vld [vmem:[%s5 + $0x8] sm:$0xf]
    %v1787 = vld [vmem:[%s5 + $0xc] sm:$0xf]
    %v1788 = vld [vmem:[%s5 + $0x10] sm:$0xf]
    %v1789 = vld [vmem:[%s5 + $0x14] sm:$0xf]
    %v1790 = vld [vmem:[%s5 + $0x18] sm:$0xf]
    %v1791 = vld [vmem:[%s5 + $0x1c] sm:$0xf]
    %v1792 = vld [vmem:[%s5 + $0x20] sm:$0xf]
    %v1793 = vld [vmem:[%s5 + $0x24] sm:$0xf]
    %v1794 = vld [vmem:[%s5 + $0x28] sm:$0xf]
    %v1795 = vld [vmem:[%s5 + $0x2c] sm:$0xf]
    %v1796 = vld [vmem:[%s5 + $0x30] sm:$0xf]
    %v1797 = vld [vmem:[%s5 + $0x34] sm:$0xf]
    %v1798 = vld [vmem:[%s5 + $0x38] sm:$0xf]
    %v1799 = vld [vmem:[%s5 + $0x3c] sm:$0xf]
    %v1800 = vld [vmem:[%s6] sm:$0x1]
    %v1802 = vlaneseq
    %v1803 = vshrl.u32 %v1802, 7
    %v1804 = vsub.s32 0, %v1803
    %v1805 = vrot.slane %v1800, %v1804
    %v1823 = vunpack.c.l.b16 %v1784
    %v1824 = vunpack.c.l.b16 %v1785
    %v1825 = vunpack.c.l.b16 %v1786
    %v1826 = vunpack.c.l.b16 %v1787
    %v1827 = vunpack.c.l.b16 %v1788
    %v1828 = vunpack.c.l.b16 %v1789
    %v1829 = vunpack.c.l.b16 %v1790
    %v1830 = vunpack.c.l.b16 %v1791
    %v1831 = vunpack.c.l.b16 %v1792
    %v1832 = vunpack.c.l.b16 %v1793
    %v1833 = vunpack.c.l.b16 %v1794
    %v1834 = vunpack.c.l.b16 %v1795
    %v1835 = vunpack.c.l.b16 %v1796
    %v1836 = vunpack.c.l.b16 %v1797
    %v1837 = vunpack.c.l.b16 %v1798
    %v1838 = vunpack.c.l.b16 %v1799
    %v1839 = vpack.c.b16 %v1824, %v1823
    %v1840 = vpack.c.b16 %v1826, %v1825
    %v1841 = vpack.c.b16 %v1828, %v1827
    %v1842 = vpack.c.b16 %v1830, %v1829
    %v1843 = vpack.c.b16 %v1832, %v1831
    %v1844 = vpack.c.b16 %v1834, %v1833
    %v1845 = vpack.c.b16 %v1836, %v1835
    %v1846 = vpack.c.b16 %v1838, %v1837
    %1855 = vmatprep.subr.bf16.mxu0 0
    %1856 = vmatpush1.bf16.msra.mxu0 %v1846
    %1857 = vmatprep.subr.bf16.mxu0 0
    %1858 = vmatpush1.bf16.msra.mxu0 %v1845
    %1859 = vmatprep.subr.bf16.mxu0 0
    %1860 = vmatpush1.bf16.msra.mxu0 %v1844
    %1861 = vmatprep.subr.bf16.mxu0 0
    %1862 = vmatpush1.bf16.msra.mxu0 %v1843
    %1863 = vmatprep.subr.bf16.mxu0 0
    %1864 = vmatpush1.bf16.msra.mxu0 %v1842
    %1865 = vmatprep.subr.bf16.mxu0 0
    %1866 = vmatpush1.bf16.msra.mxu0 %v1841
    %1867 = vmatprep.subr.bf16.mxu0 0
    %1868 = vmatpush1.bf16.msra.mxu0 %v1840
    %1869 = vmatprep.subr.bf16.mxu0 0
    %1870 = vmatpush1.bf16.msra.mxu0 %v1839
    %1871 = vmatprep.subr.bf16.mxu0 0
    %1872 = vmatpush2.bf16.msra.mxu0 0
    %1873 = vmatprep.subr.bf16.mxu0 0
    %1874 = vmatpush2.bf16.msra.mxu0 0
    %1875 = vmatprep.subr.bf16.mxu0 0
    %1876 = vmatpush2.bf16.msra.mxu0 0
    %1877 = vmatprep.subr.bf16.mxu0 0
    %1878 = vmatpush2.bf16.msra.mxu0 0
    %1879 = vmatprep.subr.bf16.mxu0 0
    %1880 = vmatpush2.bf16.msra.mxu0 0
    %1881 = vmatprep.subr.bf16.mxu0 0
    %1882 = vmatpush2.bf16.msra.mxu0 0
    %1883 = vmatprep.subr.bf16.mxu0 0
    %1884 = vmatpush2.bf16.msra.mxu0 0
    %1885 = vmatprep.subr.bf16.mxu0 0
    %1886 = vmatpush2.bf16.msra.mxu0 0
    %1887 = vmatprep.mubr.bf16.mxu0 0
    %1888 = vmatmul.mubr.bf16.gmra.mxu0 %v1768
    %v1889 = vpop.f32.mrf.mxu0
    %v1890 = vadd.f32 %v1805, %v1889
    %v1891 = vpop.f32.mrf.mxu0
    %v1892 = vpop.f32.mrf.mxu0
    %v1893 = vadd.f32 %v1805, %v1892
    %v1894 = vpop.f32.mrf.mxu0
    %1895 = vmatprep.mubr.bf16.mxu0 0
    %1896 = vmatmul.mubr.bf16.gmra.mxu0 %v1769
    %v1897 = vpop.f32.mrf.mxu0
    %v1898 = vadd.f32 %v1805, %v1897
    %v1899 = vpop.f32.mrf.mxu0
    %v1900 = vpop.f32.mrf.mxu0
    %v1901 = vadd.f32 %v1805, %v1900
    %v1902 = vpop.f32.mrf.mxu0
    %1903 = vmatprep.mubr.bf16.mxu0 0
    %1904 = vmatmul.mubr.bf16.gmra.mxu0 %v1770
    %v1905 = vpop.f32.mrf.mxu0
    %v1906 = vadd.f32 %v1805, %v1905
    %v1907 = vpop.f32.mrf.mxu0
    %v1908 = vpop.f32.mrf.mxu0
    %v1909 = vadd.f32 %v1805, %v1908
    %v1910 = vpop.f32.mrf.mxu0
    %1911 = vmatprep.mubr.bf16.mxu0 0
    %1912 = vmatmul.mubr.bf16.gmra.mxu0 %v1771
    %v1913 = vpop.f32.mrf.mxu0
    %v1914 = vadd.f32 %v1805, %v1913
    %v1915 = vpop.f32.mrf.mxu0
    %v1916 = vpop.f32.mrf.mxu0
    %v1917 = vadd.f32 %v1805, %v1916
    %v1918 = vpop.f32.mrf.mxu0
    %1919 = vmatprep.mubr.bf16.mxu0 0
    %1920 = vmatmul.mubr.bf16.gmra.mxu0 %v1772
    %v1921 = vpop.f32.mrf.mxu0
    %v1922 = vadd.f32 %v1805, %v1921
    %v1923 = vpop.f32.mrf.mxu0
    %v1924 = vpop.f32.mrf.mxu0
    %v1925 = vadd.f32 %v1805, %v1924
    %v1926 = vpop.f32.mrf.mxu0
    %1927 = vmatprep.mubr.bf16.mxu0 0
    %1928 = vmatmul.mubr.bf16.gmra.mxu0 %v1773
    %v1929 = vpop.f32.mrf.mxu0
    %v1930 = vadd.f32 %v1805, %v1929
    %v1931 = vpop.f32.mrf.mxu0
    %v1932 = vpop.f32.mrf.mxu0
    %v1933 = vadd.f32 %v1805, %v1932
    %v1934 = vpop.f32.mrf.mxu0
    %1935 = vmatprep.mubr.bf16.mxu0 0
    %1936 = vmatmul.mubr.bf16.gmra.mxu0 %v1774
    %v1937 = vpop.f32.mrf.mxu0
    %v1938 = vadd.f32 %v1805, %v1937
    %v1939 = vpop.f32.mrf.mxu0
    %v1940 = vpop.f32.mrf.mxu0
    %v1941 = vadd.f32 %v1805, %v1940
    %v1942 = vpop.f32.mrf.mxu0
    %1943 = vmatprep.mubr.bf16.mxu0 0
    %1944 = vmatmul.mubr.bf16.gmra.mxu0 %v1775
    %v1945 = vpop.f32.mrf.mxu0
    %v1946 = vadd.f32 %v1805, %v1945
    %v1947 = vpop.f32.mrf.mxu0
    %v1948 = vpop.f32.mrf.mxu0
    %v1949 = vadd.f32 %v1805, %v1948
    %v1950 = vpop.f32.mrf.mxu0
    %1951 = vmatprep.mubr.bf16.mxu0 0
    %1952 = vmatmul.mubr.bf16.gmra.mxu0 %v1776
    %v1953 = vpop.f32.mrf.mxu0
    %v1954 = vadd.f32 %v1805, %v1953
    %v1955 = vpop.f32.mrf.mxu0
    %v1956 = vpop.f32.mrf.mxu0
    %v1957 = vadd.f32 %v1805, %v1956
    %v1958 = vpop.f32.mrf.mxu0
    %1959 = vmatprep.mubr.bf16.mxu0 0
    %1960 = vmatmul.mubr.bf16.gmra.mxu0 %v1777
    %v1961 = vpop.f32.mrf.mxu0
    %v1962 = vadd.f32 %v1805, %v1961
    %v1963 = vpop.f32.mrf.mxu0
    %v1964 = vpop.f32.mrf.mxu0
    %v1965 = vadd.f32 %v1805, %v1964
    %v1966 = vpop.f32.mrf.mxu0
    %1967 = vmatprep.mubr.bf16.mxu0 0
    %1968 = vmatmul.mubr.bf16.gmra.mxu0 %v1778
    %v1969 = vpop.f32.mrf.mxu0
    %v1970 = vadd.f32 %v1805, %v1969
    %v1971 = vpop.f32.mrf.mxu0
    %v1972 = vpop.f32.mrf.mxu0
    %v1973 = vadd.f32 %v1805, %v1972
    %v1974 = vpop.f32.mrf.mxu0
    %1975 = vmatprep.mubr.bf16.mxu0 0
    %1976 = vmatmul.mubr.bf16.gmra.mxu0 %v1779
    %v1977 = vpop.f32.mrf.mxu0
    %v1978 = vadd.f32 %v1805, %v1977
    %v1979 = vpop.f32.mrf.mxu0
    %v1980 = vpop.f32.mrf.mxu0
    %v1981 = vadd.f32 %v1805, %v1980
    %v1982 = vpop.f32.mrf.mxu0
    %1983 = vmatprep.mubr.bf16.mxu0 0
    %1984 = vmatmul.mubr.bf16.gmra.mxu0 %v1780
    %v1985 = vpop.f32.mrf.mxu0
    %v1986 = vadd.f32 %v1805, %v1985
    %v1987 = vpop.f32.mrf.mxu0
    %v1988 = vpop.f32.mrf.mxu0
    %v1989 = vadd.f32 %v1805, %v1988
    %v1990 = vpop.f32.mrf.mxu0
    %1991 = vmatprep.mubr.bf16.mxu0 0
    %1992 = vmatmul.mubr.bf16.gmra.mxu0 %v1781
    %v1993 = vpop.f32.mrf.mxu0
    %v1994 = vadd.f32 %v1805, %v1993
    %v1995 = vpop.f32.mrf.mxu0
    %v1996 = vpop.f32.mrf.mxu0
    %v1997 = vadd.f32 %v1805, %v1996
    %v1998 = vpop.f32.mrf.mxu0
    %1999 = vmatprep.mubr.bf16.mxu0 0
    %2000 = vmatmul.mubr.bf16.gmra.mxu0 %v1782
    %v2001 = vpop.f32.mrf.mxu0
    %v2002 = vadd.f32 %v1805, %v2001
    %v2003 = vpop.f32.mrf.mxu0
    %v2004 = vpop.f32.mrf.mxu0
    %v2005 = vadd.f32 %v1805, %v2004
    %v2006 = vpop.f32.mrf.mxu0
    %2007 = vmatprep.mubr.bf16.mxu0 0
    %2008 = vmatmul.mubr.bf16.gmra.mxu0 %v1783
    %v2009 = vpop.f32.mrf.mxu0
    %v2010 = vadd.f32 %v1805, %v2009
    %v2011 = vpop.f32.mrf.mxu0
    %v2012 = vpop.f32.mrf.mxu0
    %v2013 = vadd.f32 %v1805, %v2012
    %v2014 = vpop.f32.mrf.mxu0
    %2015 = vdwg.mxu0
    %2016 = vst [vmem:[#allocation2] sm:$0xff] %v1890
    %2017 = vst [vmem:[#allocation2 + $0x8] sm:$0xff] %v1893
    %2018 = vst [vmem:[#allocation2 + $0x10] sm:$0xff] %v1898
    %2019 = vst [vmem:[#allocation2 + $0x18] sm:$0xff] %v1901
    %2020 = vst [vmem:[#allocation2 + $0x20] sm:$0xff] %v1906
    %2021 = vst [vmem:[#allocation2 + $0x28] sm:$0xff] %v1909
    %2022 = vst [vmem:[#allocation2 + $0x30] sm:$0xff] %v1914
    %2023 = vst [vmem:[#allocation2 + $0x38] sm:$0xff] %v1917
    %2024 = vst [vmem:[#allocation2 + $0x40] sm:$0xff] %v1922
    %2025 = vst [vmem:[#allocation2 + $0x48] sm:$0xff] %v1925
    %2026 = vst [vmem:[#allocation2 + $0x50] sm:$0xff] %v1930
    %2027 = vst [vmem:[#allocation2 + $0x58] sm:$0xff] %v1933
    %2028 = vst [vmem:[#allocation2 + $0x60] sm:$0xff] %v1938
    %2029 = vst [vmem:[#allocation2 + $0x68] sm:$0xff] %v1941
    %2030 = vst [vmem:[#allocation2 + $0x70] sm:$0xff] %v1946
    %2031 = vst [vmem:[#allocation2 + $0x78] sm:$0xff] %v1949
    %2032 = vst [vmem:[#allocation2 + $0x80] sm:$0xff] %v1954
    %2033 = vst [vmem:[#allocation2 + $0x88] sm:$0xff] %v1957
    %2034 = vst [vmem:[#allocation2 + $0x90] sm:$0xff] %v1962
    %2035 = vst [vmem:[#allocation2 + $0x98] sm:$0xff] %v1965
    %2036 = vst [vmem:[#allocation2 + $0xa0] sm:$0xff] %v1970
    %2037 = vst [vmem:[#allocation2 + $0xa8] sm:$0xff] %v1973
    %2038 = vst [vmem:[#allocation2 + $0xb0] sm:$0xff] %v1978
    %2039 = vst [vmem:[#allocation2 + $0xb8] sm:$0xff] %v1981
    %2040 = vst [vmem:[#allocation2 + $0xc0] sm:$0xff] %v1986
    %2041 = vst [vmem:[#allocation2 + $0xc8] sm:$0xff] %v1989
    %2042 = vst [vmem:[#allocation2 + $0xd0] sm:$0xff] %v1994
    %2043 = vst [vmem:[#allocation2 + $0xd8] sm:$0xff] %v1997
    %2044 = vst [vmem:[#allocation2 + $0xe0] sm:$0xff] %v2002
    %2045 = vst [vmem:[#allocation2 + $0xe8] sm:$0xff] %v2005
    %2046 = vst [vmem:[#allocation2 + $0xf0] sm:$0xff] %v2010
    %2047 = vst [vmem:[#allocation2 + $0xf8] sm:$0xff] %v2013
    // Predicated region
    $region30: #{tpu_custom_call.1} parent=1 // pred_check
      _
    $region31: #{tpu_custom_call.1} parent=1 // pred_check_branch
      %2049 = sbr.rel (0) target = $region33
    $region32: #{tpu_custom_call.1} parent=1 // pred_region
      %s2051 = ssub.s32 4096, 4096
      %2052 = vsyncadd [#allocation3], %s2051
      %s2053 = sshll.u32 [#allocation2], 4
      %s2054 = int_to_ptr.vmem [resolvable:$true] %s2053
      %2059 = dma.vmem_to_hbm [thread:$0]  %s2054, 4096, %s7, [#allocation3], 128, 128, 8
    $region33: #{tpu_custom_call.1} parent=1 // pred_fallthru
      _
    // Predicated region
    $region34: #{tpu_custom_call.1} parent=1 // pred_check
      _
    $region35: #{tpu_custom_call.1} parent=1 // pred_check_branch
      %2061 = sbr.rel (0) target = $region37
    $region36: #{tpu_custom_call.1} parent=1 // pred_region
      %2062 = dma.done [#allocation3], 4096
    $region37: #{tpu_custom_call.1} parent=1 // pred_fallthru
      _
    %2063 = vsyncpa [#allocation3], 1

</llo_original>
